<compile_context>
chip_gen: v6e
topology: v6e:2x2x1
jax: 0.10.0
libtpu: 0.0.40
codegen_flags: <defaults>
</compile_context>

<pallas_src>
import jax
import jax.numpy as jnp
from jax.experimental import pallas as pl
from jax.experimental.pallas import tpu as pltpu

N_EMBD = 32
N_HEAD = 2
HEAD_SIZE = N_EMBD // N_HEAD          # 16
FF_HIDDEN = 4 * N_EMBD                # 128
BLOCK_SIZE = 32                       # max sequence length (causal mask size)
LN_EPS = 1e-5                         # torch.nn.LayerNorm default
NEG_INF = -1e30                       # finite "masked" value (no inf-inf NaN risk)


def _layernorm(x, gamma, beta):
    mean = jnp.mean(x, axis=-1, keepdims=True)
    var = jnp.mean((x - mean) ** 2, axis=-1, keepdims=True)
    return (x - mean) * jax.lax.rsqrt(var + LN_EPS) * gamma + beta


def block_kernel(x_ref, wqkv_ref, wo_ref, w1_ref, w2_ref, b1_ref,
                 pvec_ref, mask_ref, o_ref):
    Bt, T, C = x_ref.shape
    x = x_ref[...].reshape(Bt * T, C)          # merge leading dims only (cheap)

    pvec = pvec_ref[...]                       # (6, C) packed small params (f32)
    g1, be1 = pvec[0:1, :], pvec[1:2, :]       # ln1 gamma / beta
    g2, be2 = pvec[2:3, :], pvec[3:4, :]       # ln2 gamma / beta
    bo, b2 = pvec[4:5, :], pvec[5:6, :]        # proj bias / mlp-out bias

    # ---------------- self-attention sub-block -----------------------------
    h = _layernorm(x, g1, be1)                                  # f32 (Bt*T, C)
    qkv = jnp.dot(h.astype(jnp.bfloat16), wqkv_ref[...],        # bf16 MXU, f32 acc
                  preferred_element_type=jnp.float32)           # (Bt*T, 3C)
    q = qkv[:, 0 * C:1 * C].reshape(Bt, T, C)
    k = qkv[:, 1 * C:2 * C].reshape(Bt, T, C)
    v = qkv[:, 2 * C:3 * C].reshape(Bt, T, C)

    neg_mask = mask_ref[...]                   # (T, T) additive causal mask
    sa = jnp.zeros((Bt * T, C), jnp.float32)
    # Static 2-iteration head loop; head concat is folded into the output
    # projection: sa = sum_h head_out_h @ wo_h  (no lane-granularity concat).
    for hd in range(N_HEAD):
        sl = slice(hd * HEAD_SIZE, (hd + 1) * HEAD_SIZE)
        qh = q[..., sl].astype(jnp.bfloat16)                    # (Bt, T, hs)
        kh = k[..., sl].astype(jnp.bfloat16)
        vh = v[..., sl].astype(jnp.bfloat16)
        # 1/sqrt(head_size) already folded into the Q weight columns.
        s = jnp.einsum('bqd,bkd->bqk', qh, kh,
                       preferred_element_type=jnp.float32)      # f32 scores
        s = s + neg_mask                                        # causal mask
        s = s - jnp.max(s, axis=-1, keepdims=True)              # stable softmax
        p = jnp.exp(s)
        p = p * pl.reciprocal(jnp.sum(p, axis=-1, keepdims=True), approx=True)
        ho = jnp.einsum('bqk,bkd->bqd', p.astype(jnp.bfloat16), vh,
                        preferred_element_type=jnp.float32)     # (Bt, T, hs)
        sa = sa + jnp.dot(ho.reshape(Bt * T, HEAD_SIZE).astype(jnp.bfloat16),
                          wo_ref[hd], preferred_element_type=jnp.float32)
    x = x + sa + bo                                             # residual 1

    # ---------------- feed-forward sub-block -------------------------------
    h2 = _layernorm(x, g2, be2)
    ff = jnp.dot(h2.astype(jnp.bfloat16), w1_ref[...],
                 preferred_element_type=jnp.float32) + b1_ref[...]
    ff = jnp.maximum(ff, 0.0)                                   # ReLU (f32)
    ff = jnp.dot(ff.astype(jnp.bfloat16), w2_ref[...],
                 preferred_element_type=jnp.float32) + b2
    o_ref[...] = (x + ff).reshape(Bt, T, C)                     # residual 2
    # dropout(p=0.0) is the identity -> omitted.


def transformer_block(x, params, b_tile=None):
    (wq, wk, wv, wo, bo, w1, b1, w2, b2, g1, be1, g2, be2) = params
    B, T, C = x.shape
    assert C == N_EMBD and T <= BLOCK_SIZE

    if b_tile is None:
        # Only split the batch axis (megacore) when each core would get at
        # least ~256 rows of matmul work; below that, the duplicated per-step
        # overhead costs more than the second TensorCore saves.
        if B % 2 == 0 and (B // 2) * T >= 256:
            b_tile = B // 2
        else:
            b_tile = B
    assert B % b_tile == 0
    nb = B // b_tile

    # ----- wrapper-side packing (layout plumbing, done once outside kernel) -
    scale = HEAD_SIZE ** -0.5
    wqkv = jnp.concatenate([wq * scale, wk, wv], axis=1).astype(jnp.bfloat16)
    wo_heads = wo.reshape(N_HEAD, HEAD_SIZE, C).astype(jnp.bfloat16)
    w1b = w1.astype(jnp.bfloat16)
    w2b = w2.astype(jnp.bfloat16)
    pvec = jnp.concatenate([g1, be1, g2, be2, bo, b2], axis=0)   # (6, C) f32
    tril = jnp.tril(jnp.ones((T, T), dtype=bool))
    neg_mask = jnp.where(tril, 0.0, NEG_INF).astype(jnp.float32)  # (T, T)

    def whole(shape):
        return pl.BlockSpec(shape, lambda i: (0,) * len(shape))

    in_specs = [
        pl.BlockSpec((b_tile, T, C), lambda i: (i, 0, 0)),  # x, batch tile
        whole((C, 3 * C)),                # fused wq*scale | wk | wv (bf16)
        whole((N_HEAD, HEAD_SIZE, C)),    # per-head output projection (bf16)
        whole((C, FF_HIDDEN)),            # w1 (bf16)
        whole((FF_HIDDEN, C)),            # w2 (bf16)
        whole((1, FF_HIDDEN)),            # b1 (f32)
        whole((6, C)),                    # packed: g1, be1, g2, be2, bo, b2
        whole((T, T)),                    # additive causal mask
    ]
    out_spec = pl.BlockSpec((b_tile, T, C), lambda i: (i, 0, 0))

    # TODO(synk): at realistic widths (C in the high hundreds) this
    # whole-weight-resident layout must become K-tiled (extra "arbitrary" grid
    # axis + pl.when-initialized f32 accumulator scratch) to fit v7x's 64 MiB
    # VMEM / 32 MiB default scoped limit.
    return pl.pallas_call(
        block_kernel,
        out_shape=jax.ShapeDtypeStruct((B, T, C), jnp.float32),
        grid=(nb,),
        in_specs=in_specs,
        out_specs=out_spec,
        compiler_params=pltpu.CompilerParams(
            dimension_semantics=("parallel",)),
    )(x, wqkv, wo_heads, w1b, w2b, b1, pvec, neg_mask)


# ------------------------- pure-JAX reference -------------------------------
def ref_block(x, params):
    (wq, wk, wv, wo, bo, w1, b1, w2, b2, g1, be1, g2, be2) = params
    B, T, C = x.shape

    def ln(y, g, bta):
        m = jnp.mean(y, axis=-1, keepdims=True)
        v = jnp.mean((y - m) ** 2, axis=-1, keepdims=True)
        return (y - m) / jnp.sqrt(v + LN_EPS) * g + bta

    h = ln(x, g1, be1)
    q = h @ wq
    k = h @ wk
    v = h @ wv
    q = q.reshape(B, T, N_HEAD, HEAD_SIZE).transpose(0, 2, 1, 3)
    k = k.reshape(B, T, N_HEAD, HEAD_SIZE).transpose(0, 2, 1, 3)
    v = v.reshape(B, T, N_HEAD, HEAD_SIZE).transpose(0, 2, 1, 3)
    wei = jnp.einsum("bhqd,bhkd->bhqk", q, k) * HEAD_SIZE ** -0.5
    mask = jnp.tril(jnp.ones((T, T), dtype=bool))
    wei = jnp.where(mask, wei, -jnp.inf)
    wei = jax.nn.softmax(wei, axis=-1)
    out = jnp.einsum("bhqk,bhkd->bhqd", wei, v)
    out = out.transpose(0, 2, 1, 3).reshape(B, T, C)
    x = x + out @ wo + bo
    h2 = ln(x, g2, be2)
    ff = jax.nn.relu(h2 @ w1 + b1) @ w2 + b2
    return x + ff


# --------------------------------- main --------------------------------------
if __name__ == "__main__":
    key = jax.random.PRNGKey(0)
    keys = jax.random.split(key, 16)

    B, T, C = 8, 8, N_EMBD           # 64 rows -> one overhead-amortized grid step

    x = jax.random.normal(keys[0], (B, T, C), dtype=jnp.float32)

    s = 0.05
    wq = s * jax.random.normal(keys[1], (C, C), dtype=jnp.float32)
    wk = s * jax.random.normal(keys[2], (C, C), dtype=jnp.float32)
    wv = s * jax.random.normal(keys[3], (C, C), dtype=jnp.float32)
    wo = s * jax.random.normal(keys[4], (C, C), dtype=jnp.float32)
    bo = s * jax.random.normal(keys[5], (1, C), dtype=jnp.float32)
    w1 = s * jax.random.normal(keys[6], (C, FF_HIDDEN), dtype=jnp.float32)
    b1 = s * jax.random.normal(keys[7], (1, FF_HIDDEN), dtype=jnp.float32)
    w2 = s * jax.random.normal(keys[8], (FF_HIDDEN, C), dtype=jnp.float32)
    b2 = s * jax.random.normal(keys[9], (1, C), dtype=jnp.float32)
    g1 = jnp.ones((1, C), dtype=jnp.float32) + s * jax.random.normal(keys[10], (1, C))
    be1 = s * jax.random.normal(keys[11], (1, C), dtype=jnp.float32)
    g2 = jnp.ones((1, C), dtype=jnp.float32) + s * jax.random.normal(keys[12], (1, C))
    be2 = s * jax.random.normal(keys[13], (1, C), dtype=jnp.float32)

    params = (wq, wk, wv, wo, bo, w1, b1, w2, b2, g1, be1, g2, be2)

    out = transformer_block(x, params)
    out = jax.block_until_ready(out)

    expected = ref_block(x, params)
    assert out.shape == (B, T, C)
    # Tolerance accounts for bf16 MXU operands (f32 accumulation) and the EUP
    # approx reciprocal in the softmax normalization; all elementwise math,
    # residuals and LayerNorms remain f32.
    assert jnp.allclose(out, expected, atol=2e-2, rtol=2e-2), (
        float(jnp.max(jnp.abs(out - expected))))

    print("KERNEL_OK")
</pallas_src>

<mosaic_0001>
module attributes {stable_mosaic.version = 11 : i64} {
  func.func @block_kernel(%arg0: i32, %arg1: memref<8x8x32xf32, #tpu.memory_space<vmem>>, %arg2: memref<32x96xbf16, #tpu.memory_space<vmem>>, %arg3: memref<2x16x32xbf16, #tpu.memory_space<vmem>>, %arg4: memref<32x128xbf16, #tpu.memory_space<vmem>>, %arg5: memref<128x32xbf16, #tpu.memory_space<vmem>>, %arg6: memref<1x128xf32, #tpu.memory_space<vmem>>, %arg7: memref<6x32xf32, #tpu.memory_space<vmem>>, %arg8: memref<8x8xf32, #tpu.memory_space<vmem>>, %arg9: memref<8x8x32xf32, #tpu.memory_space<vmem>>) attributes {dimension_semantics = [#tpu.dimension_semantics<parallel>], iteration_bounds = array<i64: 1>, scalar_prefetch = 0 : i64, scratch_operands = 0 : i64, tpu.core_type = #tpu.core_type<tc>, window_params = [{transform_indices = @transform_0, window_bounds = array<i64: 8, 8, 32>}, {pipeline_mode = #tpu.pipeline_mode<synchronous>, transform_indices = @transform_1, window_bounds = array<i64: 32, 96>}, {pipeline_mode = #tpu.pipeline_mode<synchronous>, transform_indices = @transform_2, window_bounds = array<i64: 2, 16, 32>}, {pipeline_mode = #tpu.pipeline_mode<synchronous>, transform_indices = @transform_3, window_bounds = array<i64: 32, 128>}, {pipeline_mode = #tpu.pipeline_mode<synchronous>, transform_indices = @transform_4, window_bounds = array<i64: 128, 32>}, {pipeline_mode = #tpu.pipeline_mode<synchronous>, transform_indices = @transform_5, window_bounds = array<i64: 1, 128>}, {pipeline_mode = #tpu.pipeline_mode<synchronous>, transform_indices = @transform_6, window_bounds = array<i64: 6, 32>}, {pipeline_mode = #tpu.pipeline_mode<synchronous>, transform_indices = @transform_7, window_bounds = array<i64: 8, 8>}, {transform_indices = @transform_8, window_bounds = array<i64: 8, 8, 32>}]} {
    %c0 = arith.constant 0 : index
    %c0_0 = arith.constant 0 : index
    %c0_1 = arith.constant 0 : index
    %0 = vector.load %arg1[%c0, %c0_0, %c0_1] : memref<8x8x32xf32, #tpu.memory_space<vmem>>, vector<8x8x32xf32>
    %1 = vector.shape_cast %0 : vector<8x8x32xf32> to vector<64x32xf32>
    %c0_2 = arith.constant 0 : index
    %c0_3 = arith.constant 0 : index
    %2 = vector.load %arg7[%c0_2, %c0_3] : memref<6x32xf32, #tpu.memory_space<vmem>>, vector<6x32xf32>
    %3 = vector.extract_strided_slice %2 {offsets = [0, 0], sizes = [1, 32], strides = [1, 1]} : vector<6x32xf32> to vector<1x32xf32>
    %4 = vector.extract_strided_slice %2 {offsets = [1, 0], sizes = [1, 32], strides = [1, 1]} : vector<6x32xf32> to vector<1x32xf32>
    %5 = vector.extract_strided_slice %2 {offsets = [2, 0], sizes = [1, 32], strides = [1, 1]} : vector<6x32xf32> to vector<1x32xf32>
    %6 = vector.extract_strided_slice %2 {offsets = [3, 0], sizes = [1, 32], strides = [1, 1]} : vector<6x32xf32> to vector<1x32xf32>
    %7 = vector.extract_strided_slice %2 {offsets = [4, 0], sizes = [1, 32], strides = [1, 1]} : vector<6x32xf32> to vector<1x32xf32>
    %8 = vector.extract_strided_slice %2 {offsets = [5, 0], sizes = [1, 32], strides = [1, 1]} : vector<6x32xf32> to vector<1x32xf32>
    %cst = arith.constant dense<0.000000e+00> : vector<64xf32>
    %9 = vector.multi_reduction <add>, %1, %cst [1] : vector<64x32xf32> to vector<64xf32>
    %10 = vector.shape_cast %9 : vector<64xf32> to vector<64x1xf32>
    %cst_4 = arith.constant 3.200000e+01 : f32
    %11 = vector.broadcast %cst_4 : f32 to vector<64x1xf32>
    %12 = arith.divf %10, %11 : vector<64x1xf32>
    %13 = vector.broadcast %12 : vector<64x1xf32> to vector<64x32xf32>
    %14 = arith.subf %1, %13 : vector<64x32xf32>
    %15 = arith.mulf %14, %14 : vector<64x32xf32>
    %cst_5 = arith.constant dense<0.000000e+00> : vector<64xf32>
    %16 = vector.multi_reduction <add>, %15, %cst_5 [1] : vector<64x32xf32> to vector<64xf32>
    %17 = vector.shape_cast %16 : vector<64xf32> to vector<64x1xf32>
    %cst_6 = arith.constant 3.200000e+01 : f32
    %18 = vector.broadcast %cst_6 : f32 to vector<64x1xf32>
    %19 = arith.divf %17, %18 : vector<64x1xf32>
    %20 = vector.broadcast %12 : vector<64x1xf32> to vector<64x32xf32>
    %21 = arith.subf %1, %20 : vector<64x32xf32>
    %cst_7 = arith.constant 9.99999974E-6 : f32
    %22 = vector.broadcast %cst_7 : f32 to vector<64x1xf32>
    %23 = arith.addf %19, %22 : vector<64x1xf32>
    %24 = math.rsqrt %23 : vector<64x1xf32>
    %25 = vector.broadcast %24 : vector<64x1xf32> to vector<64x32xf32>
    %26 = arith.mulf %21, %25 : vector<64x32xf32>
    %27 = vector.broadcast %3 : vector<1x32xf32> to vector<64x32xf32>
    %28 = arith.mulf %26, %27 : vector<64x32xf32>
    %29 = vector.broadcast %4 : vector<1x32xf32> to vector<64x32xf32>
    %30 = arith.addf %28, %29 : vector<64x32xf32>
    %31 = arith.truncf %30 : vector<64x32xf32> to vector<64x32xbf16>
    %c0_8 = arith.constant 0 : index
    %c0_9 = arith.constant 0 : index
    %32 = vector.load %arg2[%c0_8, %c0_9] : memref<32x96xbf16, #tpu.memory_space<vmem>>, vector<32x96xbf16>
    %cst_10 = arith.constant dense<0.000000e+00> : vector<64x96xf32>
    %33 = tpu.matmul %31, %32, %cst_10 {dimension_numbers = #tpu.dot_dimension_numbers<[1], [0], [0], [1], [0, 0, 1, 1], [], []>} : vector<64x32xbf16>, vector<32x96xbf16>, vector<64x96xf32> -> vector<64x96xf32>
    %34 = vector.extract_strided_slice %33 {offsets = [0, 0], sizes = [64, 32], strides = [1, 1]} : vector<64x96xf32> to vector<64x32xf32>
    %35 = vector.shape_cast %34 : vector<64x32xf32> to vector<8x8x32xf32>
    %36 = vector.extract_strided_slice %33 {offsets = [0, 32], sizes = [64, 32], strides = [1, 1]} : vector<64x96xf32> to vector<64x32xf32>
    %37 = vector.shape_cast %36 : vector<64x32xf32> to vector<8x8x32xf32>
    %38 = vector.extract_strided_slice %33 {offsets = [0, 64], sizes = [64, 32], strides = [1, 1]} : vector<64x96xf32> to vector<64x32xf32>
    %39 = vector.shape_cast %38 : vector<64x32xf32> to vector<8x8x32xf32>
    %c0_11 = arith.constant 0 : index
    %c0_12 = arith.constant 0 : index
    %40 = vector.load %arg8[%c0_11, %c0_12] : memref<8x8xf32, #tpu.memory_space<vmem>>, vector<8x8xf32>
    %cst_13 = arith.constant 0.000000e+00 : f32
    %41 = vector.broadcast %cst_13 : f32 to vector<64x32xf32>
    %42 = vector.extract_strided_slice %35 {offsets = [0, 0, 0], sizes = [8, 8, 16], strides = [1, 1, 1]} : vector<8x8x32xf32> to vector<8x8x16xf32>
    %43 = arith.truncf %42 : vector<8x8x16xf32> to vector<8x8x16xbf16>
    %44 = vector.extract_strided_slice %37 {offsets = [0, 0, 0], sizes = [8, 8, 16], strides = [1, 1, 1]} : vector<8x8x32xf32> to vector<8x8x16xf32>
    %45 = arith.truncf %44 : vector<8x8x16xf32> to vector<8x8x16xbf16>
    %46 = vector.extract_strided_slice %39 {offsets = [0, 0, 0], sizes = [8, 8, 16], strides = [1, 1, 1]} : vector<8x8x32xf32> to vector<8x8x16xf32>
    %47 = arith.truncf %46 : vector<8x8x16xf32> to vector<8x8x16xbf16>
    "tpu.trace_start"() <{level = 10 : i32, message = "bqd,bkd->bqk"}> : () -> ()
    %cst_14 = arith.constant dense<0.000000e+00> : vector<8x8x8xf32>
    %48 = tpu.matmul %43, %45, %cst_14 {dimension_numbers = #tpu.dot_dimension_numbers<[2], [2], [1], [1], [0, 0, 0, 1, 1, 1], [0], [0]>} : vector<8x8x16xbf16>, vector<8x8x16xbf16>, vector<8x8x8xf32> -> vector<8x8x8xf32>
    "tpu.trace_stop"() : () -> ()
    %49 = vector.shape_cast %40 : vector<8x8xf32> to vector<1x8x8xf32>
    %50 = vector.broadcast %49 : vector<1x8x8xf32> to vector<8x8x8xf32>
    %51 = arith.addf %48, %50 : vector<8x8x8xf32>
    %cst_15 = arith.constant dense<0xFF800000> : vector<8x8xf32>
    %52 = vector.multi_reduction <maximumf>, %51, %cst_15 [2] : vector<8x8x8xf32> to vector<8x8xf32>
    %53 = vector.shape_cast %52 : vector<8x8xf32> to vector<8x8x1xf32>
    %54 = vector.broadcast %53 : vector<8x8x1xf32> to vector<8x8x8xf32>
    %55 = arith.subf %51, %54 : vector<8x8x8xf32>
    %56 = math.exp %55 : vector<8x8x8xf32>
    %cst_16 = arith.constant dense<0.000000e+00> : vector<8x8xf32>
    %57 = vector.multi_reduction <add>, %56, %cst_16 [2] : vector<8x8x8xf32> to vector<8x8xf32>
    %58 = vector.shape_cast %57 : vector<8x8xf32> to vector<8x8x1xf32>
    %59 = tpu.reciprocal %58 {approx = true} : vector<8x8x1xf32> -> vector<8x8x1xf32>
    %60 = vector.broadcast %59 : vector<8x8x1xf32> to vector<8x8x8xf32>
    %61 = arith.mulf %56, %60 : vector<8x8x8xf32>
    %62 = arith.truncf %61 : vector<8x8x8xf32> to vector<8x8x8xbf16>
    "tpu.trace_start"() <{level = 10 : i32, message = "bqk,bkd->bqd"}> : () -> ()
    %cst_17 = arith.constant dense<0.000000e+00> : vector<8x8x16xf32>
    %63 = tpu.matmul %62, %47, %cst_17 {dimension_numbers = #tpu.dot_dimension_numbers<[2], [1], [1], [2], [0, 0, 0, 1, 1, 2], [0], [0]>} : vector<8x8x8xbf16>, vector<8x8x16xbf16>, vector<8x8x16xf32> -> vector<8x8x16xf32>
    "tpu.trace_stop"() : () -> ()
    %64 = vector.shape_cast %63 : vector<8x8x16xf32> to vector<64x16xf32>
    %65 = arith.truncf %64 : vector<64x16xf32> to vector<64x16xbf16>
    %c0_18 = arith.constant 0 : index
    %c0_19 = arith.constant 0 : index
    %c0_20 = arith.constant 0 : index
    %66 = vector.load %arg3[%c0_18, %c0_19, %c0_20] : memref<2x16x32xbf16, #tpu.memory_space<vmem>>, vector<1x16x32xbf16>
    %67 = vector.shape_cast %66 : vector<1x16x32xbf16> to vector<16x32xbf16>
    %cst_21 = arith.constant dense<0.000000e+00> : vector<64x32xf32>
    %68 = tpu.matmul %65, %67, %cst_21 {dimension_numbers = #tpu.dot_dimension_numbers<[1], [0], [0], [1], [0, 0, 1, 1], [], []>} : vector<64x16xbf16>, vector<16x32xbf16>, vector<64x32xf32> -> vector<64x32xf32>
    %69 = arith.addf %41, %68 : vector<64x32xf32>
    %70 = vector.extract_strided_slice %35 {offsets = [0, 0, 16], sizes = [8, 8, 16], strides = [1, 1, 1]} : vector<8x8x32xf32> to vector<8x8x16xf32>
    %71 = arith.truncf %70 : vector<8x8x16xf32> to vector<8x8x16xbf16>
    %72 = vector.extract_strided_slice %37 {offsets = [0, 0, 16], sizes = [8, 8, 16], strides = [1, 1, 1]} : vector<8x8x32xf32> to vector<8x8x16xf32>
    %73 = arith.truncf %72 : vector<8x8x16xf32> to vector<8x8x16xbf16>
    %74 = vector.extract_strided_slice %39 {offsets = [0, 0, 16], sizes = [8, 8, 16], strides = [1, 1, 1]} : vector<8x8x32xf32> to vector<8x8x16xf32>
    %75 = arith.truncf %74 : vector<8x8x16xf32> to vector<8x8x16xbf16>
    "tpu.trace_start"() <{level = 10 : i32, message = "bqd,bkd->bqk"}> : () -> ()
    %cst_22 = arith.constant dense<0.000000e+00> : vector<8x8x8xf32>
    %76 = tpu.matmul %71, %73, %cst_22 {dimension_numbers = #tpu.dot_dimension_numbers<[2], [2], [1], [1], [0, 0, 0, 1, 1, 1], [0], [0]>} : vector<8x8x16xbf16>, vector<8x8x16xbf16>, vector<8x8x8xf32> -> vector<8x8x8xf32>
    "tpu.trace_stop"() : () -> ()
    %77 = vector.shape_cast %40 : vector<8x8xf32> to vector<1x8x8xf32>
    %78 = vector.broadcast %77 : vector<1x8x8xf32> to vector<8x8x8xf32>
    %79 = arith.addf %76, %78 : vector<8x8x8xf32>
    %cst_23 = arith.constant dense<0xFF800000> : vector<8x8xf32>
    %80 = vector.multi_reduction <maximumf>, %79, %cst_23 [2] : vector<8x8x8xf32> to vector<8x8xf32>
    %81 = vector.shape_cast %80 : vector<8x8xf32> to vector<8x8x1xf32>
    %82 = vector.broadcast %81 : vector<8x8x1xf32> to vector<8x8x8xf32>
    %83 = arith.subf %79, %82 : vector<8x8x8xf32>
    %84 = math.exp %83 : vector<8x8x8xf32>
    %cst_24 = arith.constant dense<0.000000e+00> : vector<8x8xf32>
    %85 = vector.multi_reduction <add>, %84, %cst_24 [2] : vector<8x8x8xf32> to vector<8x8xf32>
    %86 = vector.shape_cast %85 : vector<8x8xf32> to vector<8x8x1xf32>
    %87 = tpu.reciprocal %86 {approx = true} : vector<8x8x1xf32> -> vector<8x8x1xf32>
    %88 = vector.broadcast %87 : vector<8x8x1xf32> to vector<8x8x8xf32>
    %89 = arith.mulf %84, %88 : vector<8x8x8xf32>
    %90 = arith.truncf %89 : vector<8x8x8xf32> to vector<8x8x8xbf16>
    "tpu.trace_start"() <{level = 10 : i32, message = "bqk,bkd->bqd"}> : () -> ()
    %cst_25 = arith.constant dense<0.000000e+00> : vector<8x8x16xf32>
    %91 = tpu.matmul %90, %75, %cst_25 {dimension_numbers = #tpu.dot_dimension_numbers<[2], [1], [1], [2], [0, 0, 0, 1, 1, 2], [0], [0]>} : vector<8x8x8xbf16>, vector<8x8x16xbf16>, vector<8x8x16xf32> -> vector<8x8x16xf32>
    "tpu.trace_stop"() : () -> ()
    %92 = vector.shape_cast %91 : vector<8x8x16xf32> to vector<64x16xf32>
    %93 = arith.truncf %92 : vector<64x16xf32> to vector<64x16xbf16>
    %c1 = arith.constant 1 : index
    %c0_26 = arith.constant 0 : index
    %c0_27 = arith.constant 0 : index
    %94 = vector.load %arg3[%c1, %c0_26, %c0_27] : memref<2x16x32xbf16, #tpu.memory_space<vmem>>, vector<1x16x32xbf16>
    %95 = vector.shape_cast %94 : vector<1x16x32xbf16> to vector<16x32xbf16>
    %cst_28 = arith.constant dense<0.000000e+00> : vector<64x32xf32>
    %96 = tpu.matmul %93, %95, %cst_28 {dimension_numbers = #tpu.dot_dimension_numbers<[1], [0], [0], [1], [0, 0, 1, 1], [], []>} : vector<64x16xbf16>, vector<16x32xbf16>, vector<64x32xf32> -> vector<64x32xf32>
    %97 = arith.addf %69, %96 : vector<64x32xf32>
    %98 = arith.addf %1, %97 : vector<64x32xf32>
    %99 = vector.broadcast %7 : vector<1x32xf32> to vector<64x32xf32>
    %100 = arith.addf %98, %99 : vector<64x32xf32>
    %cst_29 = arith.constant dense<0.000000e+00> : vector<64xf32>
    %101 = vector.multi_reduction <add>, %100, %cst_29 [1] : vector<64x32xf32> to vector<64xf32>
    %102 = vector.shape_cast %101 : vector<64xf32> to vector<64x1xf32>
    %cst_30 = arith.constant 3.200000e+01 : f32
    %103 = vector.broadcast %cst_30 : f32 to vector<64x1xf32>
    %104 = arith.divf %102, %103 : vector<64x1xf32>
    %105 = vector.broadcast %104 : vector<64x1xf32> to vector<64x32xf32>
    %106 = arith.subf %100, %105 : vector<64x32xf32>
    %107 = arith.mulf %106, %106 : vector<64x32xf32>
    %cst_31 = arith.constant dense<0.000000e+00> : vector<64xf32>
    %108 = vector.multi_reduction <add>, %107, %cst_31 [1] : vector<64x32xf32> to vector<64xf32>
    %109 = vector.shape_cast %108 : vector<64xf32> to vector<64x1xf32>
    %cst_32 = arith.constant 3.200000e+01 : f32
    %110 = vector.broadcast %cst_32 : f32 to vector<64x1xf32>
    %111 = arith.divf %109, %110 : vector<64x1xf32>
    %112 = vector.broadcast %104 : vector<64x1xf32> to vector<64x32xf32>
    %113 = arith.subf %100, %112 : vector<64x32xf32>
    %cst_33 = arith.constant 9.99999974E-6 : f32
    %114 = vector.broadcast %cst_33 : f32 to vector<64x1xf32>
    %115 = arith.addf %111, %114 : vector<64x1xf32>
    %116 = math.rsqrt %115 : vector<64x1xf32>
    %117 = vector.broadcast %116 : vector<64x1xf32> to vector<64x32xf32>
    %118 = arith.mulf %113, %117 : vector<64x32xf32>
    %119 = vector.broadcast %5 : vector<1x32xf32> to vector<64x32xf32>
    %120 = arith.mulf %118, %119 : vector<64x32xf32>
    %121 = vector.broadcast %6 : vector<1x32xf32> to vector<64x32xf32>
    %122 = arith.addf %120, %121 : vector<64x32xf32>
    %123 = arith.truncf %122 : vector<64x32xf32> to vector<64x32xbf16>
    %c0_34 = arith.constant 0 : index
    %c0_35 = arith.constant 0 : index
    %124 = vector.load %arg4[%c0_34, %c0_35] : memref<32x128xbf16, #tpu.memory_space<vmem>>, vector<32x128xbf16>
    %cst_36 = arith.constant dense<0.000000e+00> : vector<64x128xf32>
    %125 = tpu.matmul %123, %124, %cst_36 {dimension_numbers = #tpu.dot_dimension_numbers<[1], [0], [0], [1], [0, 0, 1, 1], [], []>} : vector<64x32xbf16>, vector<32x128xbf16>, vector<64x128xf32> -> vector<64x128xf32>
    %c0_37 = arith.constant 0 : index
    %c0_38 = arith.constant 0 : index
    %126 = vector.load %arg6[%c0_37, %c0_38] : memref<1x128xf32, #tpu.memory_space<vmem>>, vector<1x128xf32>
    %127 = vector.broadcast %126 : vector<1x128xf32> to vector<64x128xf32>
    %128 = arith.addf %125, %127 : vector<64x128xf32>
    %cst_39 = arith.constant 0.000000e+00 : f32
    %129 = vector.broadcast %cst_39 : f32 to vector<64x128xf32>
    %130 = arith.maximumf %128, %129 : vector<64x128xf32>
    %131 = arith.truncf %130 : vector<64x128xf32> to vector<64x128xbf16>
    %c0_40 = arith.constant 0 : index
    %c0_41 = arith.constant 0 : index
    %132 = vector.load %arg5[%c0_40, %c0_41] : memref<128x32xbf16, #tpu.memory_space<vmem>>, vector<128x32xbf16>
    %cst_42 = arith.constant dense<0.000000e+00> : vector<64x32xf32>
    %133 = tpu.matmul %131, %132, %cst_42 {dimension_numbers = #tpu.dot_dimension_numbers<[1], [0], [0], [1], [0, 0, 1, 1], [], []>} : vector<64x128xbf16>, vector<128x32xbf16>, vector<64x32xf32> -> vector<64x32xf32>
    %134 = vector.broadcast %8 : vector<1x32xf32> to vector<64x32xf32>
    %135 = arith.addf %133, %134 : vector<64x32xf32>
    %136 = arith.addf %100, %135 : vector<64x32xf32>
    %137 = vector.shape_cast %136 : vector<64x32xf32> to vector<8x8x32xf32>
    %c0_43 = arith.constant 0 : index
    %c0_44 = arith.constant 0 : index
    %c0_45 = arith.constant 0 : index
    %138 = vector.load %arg9[%c0_43, %c0_44, %c0_45] : memref<8x8x32xf32, #tpu.memory_space<vmem>>, vector<8x8x32xf32>
    tpu.vector_store %arg9[%c0_43, %c0_44, %c0_45], %137 {strides = array<i32>} : memref<8x8x32xf32, #tpu.memory_space<vmem>>, vector<8x8x32xf32>,
    return
  }
  func.func @transform_0(%arg0: i32) -> (i32, i32, i32) {
    %c0_i32 = arith.constant 0 : i32
    %c0_i32_0 = arith.constant 0 : i32
    %c0_i32_1 = arith.constant 0 : i32
    return %arg0, %c0_i32, %c0_i32_0 : i32, i32, i32
  }
  func.func @transform_1(%arg0: i32) -> (i32, i32) {
    %c0_i32 = arith.constant 0 : i32
    %c0_i32_0 = arith.constant 0 : i32
    %c0_i32_1 = arith.constant 0 : i32
    return %c0_i32, %c0_i32_0 : i32, i32
  }
  func.func @transform_2(%arg0: i32) -> (i32, i32, i32) {
    %c0_i32 = arith.constant 0 : i32
    %c0_i32_0 = arith.constant 0 : i32
    %c0_i32_1 = arith.constant 0 : i32
    %c0_i32_2 = arith.constant 0 : i32
    return %c0_i32, %c0_i32_0, %c0_i32_1 : i32, i32, i32
  }
  func.func @transform_3(%arg0: i32) -> (i32, i32) {
    %c0_i32 = arith.constant 0 : i32
    %c0_i32_0 = arith.constant 0 : i32
    %c0_i32_1 = arith.constant 0 : i32
    return %c0_i32, %c0_i32_0 : i32, i32
  }
  func.func @transform_4(%arg0: i32) -> (i32, i32) {
    %c0_i32 = arith.constant 0 : i32
    %c0_i32_0 = arith.constant 0 : i32
    %c0_i32_1 = arith.constant 0 : i32
    return %c0_i32, %c0_i32_0 : i32, i32
  }
  func.func @transform_5(%arg0: i32) -> (i32, i32) {
    %c0_i32 = arith.constant 0 : i32
    %c0_i32_0 = arith.constant 0 : i32
    %c0_i32_1 = arith.constant 0 : i32
    return %c0_i32, %c0_i32_0 : i32, i32
  }
  func.func @transform_6(%arg0: i32) -> (i32, i32) {
    %c0_i32 = arith.constant 0 : i32
    %c0_i32_0 = arith.constant 0 : i32
    %c0_i32_1 = arith.constant 0 : i32
    return %c0_i32, %c0_i32_0 : i32, i32
  }
  func.func @transform_7(%arg0: i32) -> (i32, i32) {
    %c0_i32 = arith.constant 0 : i32
    %c0_i32_0 = arith.constant 0 : i32
    %c0_i32_1 = arith.constant 0 : i32
    return %c0_i32, %c0_i32_0 : i32, i32
  }
  func.func @transform_8(%arg0: i32) -> (i32, i32, i32) {
    %c0_i32 = arith.constant 0 : i32
    %c0_i32_0 = arith.constant 0 : i32
    %c0_i32_1 = arith.constant 0 : i32
    return %arg0, %c0_i32, %c0_i32_0 : i32, i32, i32
  }
}

</mosaic_0001>

<llo_original>
// kernel: tpu_custom_call.1
$region0: #{tpu_custom_call.1}
  #allocation0 [shape = 'u32[]', space=smem, size = 0x4, offset = 0x4, fixed_abs, tag = 'smem constant byte address 0x4 - core index']
  #allocation1 [shape = 'u32[144,128]{1,0:T(1,128)}', space=vmem, size = 0x12000, scoped, tag = 'internal scratch']
  %s0 = inlined_call_operand.vmem [shape: f32[8,8,32], index: 0, kind: input, shape index: {}]
  %s1 = inlined_call_operand.vmem [shape: bf16[32,96], index: 1, kind: input, shape index: {}]
  %s2 = inlined_call_operand.hbm [shape: bf16[2,16,32], index: 2, kind: input, shape index: {}]
  %s3 = inlined_call_operand.hbm [shape: bf16[32,128], index: 3, kind: input, shape index: {}]
  %s4 = inlined_call_operand.vmem [shape: bf16[128,32], index: 4, kind: input, shape index: {}]
  %s5 = inlined_call_operand.vmem [shape: f32[1,128], index: 5, kind: input, shape index: {}]
  %s6 = inlined_call_operand.vmem [shape: f32[6,32], index: 6, kind: input, shape index: {}]
  %s7 = inlined_call_operand.hbm [shape: f32[8,8], index: 7, kind: input, shape index: {}]
  %s8 = inlined_call_operand.hbm [shape: f32[8,8,32], index: 8, kind: output, shape index: {}]
  %s9 = sld [smem:[#allocation0]]
  $region54: #{tpu_custom_call.1} parent=0
    _
  %s11 = ssub.s32 1, %s9
  %s12 = scalar_select 0, %s11, %s9
  $region1: #{tpu_custom_call.1} parent=0
    #allocation2 [shape = 'u8[8192]{0}', space=vmem, size = 0x2000, scoped, tag = 'input window, operand 2, single buffered']
    #allocation3 [shape = 's32[1]{0}', space=sflag, size = 0x4, scoped, tag = 'scoped memory for tpu_custom_call.1']
    #allocation4 [shape = 's32[1]{0}', space=sflag, size = 0x4, scoped, tag = 'scoped memory for tpu_custom_call.1']
    #allocation5 [shape = 'u8[8192]{0}', space=vmem, size = 0x2000, scoped, tag = 'input window, operand 3, single buffered']
    #allocation6 [shape = 's32[1]{0}', space=sflag, size = 0x4, scoped, tag = 'scoped memory for tpu_custom_call.1']
    #allocation7 [shape = 'u8[4096]{0}', space=vmem, size = 0x1000, scoped, tag = 'input window, operand 7, single buffered']
    #allocation8 [shape = 'u8[32768]{0}', space=vmem, size = 0x8000, scoped, tag = 'output window, operand 0, single buffered']
    %13 = vsyncpa [#allocation3], 0
    %14 = vsyncpa [#allocation6], 0
    %15 = vsyncpa [#allocation4], 0
    // Predicated region
    $region2: #{tpu_custom_call.1} parent=1 // pred_check
      _
    $region3: #{tpu_custom_call.1} parent=1 // pred_check_branch
      %17 = sbr.rel (0) target = $region5
    $region4: #{tpu_custom_call.1} parent=1 // pred_region
      _
    $region5: #{tpu_custom_call.1} parent=1 // pred_fallthru
      _
    // Predicated region
    $region6: #{tpu_custom_call.1} parent=1 // pred_check
      _
    $region7: #{tpu_custom_call.1} parent=1 // pred_check_branch
      %19 = sbr.rel (0) target = $region9
    $region8: #{tpu_custom_call.1} parent=1 // pred_region
      _
    $region9: #{tpu_custom_call.1} parent=1 // pred_fallthru
      _
    // Predicated region
    $region10: #{tpu_custom_call.1} parent=1 // pred_check
      _
    $region11: #{tpu_custom_call.1} parent=1 // pred_check_branch
      %21 = sbr.rel (0) target = $region13
    $region12: #{tpu_custom_call.1} parent=1 // pred_region
      %s23 = ssub.s32 256, 256
      %24 = vsyncadd [#allocation3], %s23
      %s25 = sshll.u32 [#allocation2], 4
      %s26 = int_to_ptr.vmem [resolvable:$true] %s25
      %31 = dma.hbm_to_vmem [thread:$0]  %s2, 256, %s26, [#allocation3], 64, 64, 4
    $region13: #{tpu_custom_call.1} parent=1 // pred_fallthru
      _
    // Predicated region
    $region14: #{tpu_custom_call.1} parent=1 // pred_check
      _
    $region15: #{tpu_custom_call.1} parent=1 // pred_check_branch
      %33 = sbr.rel (0) target = $region17
    $region16: #{tpu_custom_call.1} parent=1 // pred_region
      %s35 = ssub.s32 256, 256
      %36 = vsyncadd [#allocation6], %s35
      %s37 = sshll.u32 [#allocation5], 4
      %s38 = int_to_ptr.vmem [resolvable:$true] %s37
      %43 = dma.hbm_to_vmem [thread:$0]  %s3, 256, %s38, [#allocation6], 64, 64, 4
    $region17: #{tpu_custom_call.1} parent=1 // pred_fallthru
      _
    // Predicated region
    $region18: #{tpu_custom_call.1} parent=1 // pred_check
      _
    $region19: #{tpu_custom_call.1} parent=1 // pred_check_branch
      %45 = sbr.rel (0) target = $region21
    $region20: #{tpu_custom_call.1} parent=1 // pred_region
      _
    $region21: #{tpu_custom_call.1} parent=1 // pred_fallthru
      _
    // Predicated region
    $region22: #{tpu_custom_call.1} parent=1 // pred_check
      _
    $region23: #{tpu_custom_call.1} parent=1 // pred_check_branch
      %47 = sbr.rel (0) target = $region25
    $region24: #{tpu_custom_call.1} parent=1 // pred_region
      _
    $region25: #{tpu_custom_call.1} parent=1 // pred_fallthru
      _
    // Predicated region
    $region26: #{tpu_custom_call.1} parent=1 // pred_check
      _
    $region27: #{tpu_custom_call.1} parent=1 // pred_check_branch
      %49 = sbr.rel (0) target = $region29
    $region28: #{tpu_custom_call.1} parent=1 // pred_region
      _
    $region29: #{tpu_custom_call.1} parent=1 // pred_fallthru
      _
    // Predicated region
    $region30: #{tpu_custom_call.1} parent=1 // pred_check
      _
    $region31: #{tpu_custom_call.1} parent=1 // pred_check_branch
      %51 = sbr.rel (0) target = $region33
    $region32: #{tpu_custom_call.1} parent=1 // pred_region
      %s53 = ssub.s32 128, 128
      %54 = vsyncadd [#allocation6], %s53
      %s56 = sshll.u32 [#allocation7], 4
      %s57 = int_to_ptr.vmem [resolvable:$true] %s56
      %59 = dma.hbm_to_vmem [thread:$0]  %s7, 128, %s57, [#allocation6]
    $region33: #{tpu_custom_call.1} parent=1 // pred_fallthru
      _
    // Predicated region
    $region34: #{tpu_custom_call.1} parent=1 // pred_check
      _
    $region35: #{tpu_custom_call.1} parent=1 // pred_check_branch
      %61 = sbr.rel (0) target = $region37
    $region36: #{tpu_custom_call.1} parent=1 // pred_region
      %62 = dma.done [#allocation3], 256
    $region37: #{tpu_custom_call.1} parent=1 // pred_fallthru
      _
    // Predicated region
    $region38: #{tpu_custom_call.1} parent=1 // pred_check
      _
    $region39: #{tpu_custom_call.1} parent=1 // pred_check_branch
      %64 = sbr.rel (0) target = $region41
    $region40: #{tpu_custom_call.1} parent=1 // pred_region
      %65 = dma.done [#allocation6], 256
    $region41: #{tpu_custom_call.1} parent=1 // pred_fallthru
      _
    // Predicated region
    $region42: #{tpu_custom_call.1} parent=1 // pred_check
      _
    $region43: #{tpu_custom_call.1} parent=1 // pred_check_branch
      %67 = sbr.rel (0) target = $region45
    $region44: #{tpu_custom_call.1} parent=1 // pred_region
      %68 = dma.done [#allocation6], 128
    $region45: #{tpu_custom_call.1} parent=1 // pred_fallthru
      _
    %v70 = vld [vmem:[%s0] sm:$0xff]
    %v71 = vld [vmem:[%s0 + $0x8] sm:$0xff]
    %v72 = vld [vmem:[%s0 + $0x10] sm:$0xff]
    %v73 = vld [vmem:[%s0 + $0x18] sm:$0xff]
    %v74 = vld [vmem:[%s0 + $0x20] sm:$0xff]
    %v75 = vld [vmem:[%s0 + $0x28] sm:$0xff]
    %v76 = vld [vmem:[%s0 + $0x30] sm:$0xff]
    %v77 = vld [vmem:[%s0 + $0x38] sm:$0xff]
    %v78 = vld [vmem:[%s6] sm:$0x3f]
    %vm79 = vcmask 261120
    %v80 = vsel %vm79, %v70, 0.0
    %81 = vadd.xlane.f32.xlu0 %v80
    %v82 = vpop.xlane.xlu0 %81
    %v83 = vsel %vm79, %v71, 0.0
    %84 = vadd.xlane.f32.xlu0 %v83
    %v85 = vpop.xlane.xlu0 %84
    %v86 = vsel %vm79, %v72, 0.0
    %87 = vadd.xlane.f32.xlu0 %v86
    %v88 = vpop.xlane.xlu0 %87
    %v89 = vsel %vm79, %v73, 0.0
    %90 = vadd.xlane.f32.xlu0 %v89
    %v91 = vpop.xlane.xlu0 %90
    %v92 = vsel %vm79, %v74, 0.0
    %93 = vadd.xlane.f32.xlu0 %v92
    %v94 = vpop.xlane.xlu0 %93
    %v95 = vsel %vm79, %v75, 0.0
    %96 = vadd.xlane.f32.xlu0 %v95
    %v97 = vpop.xlane.xlu0 %96
    %v98 = vsel %vm79, %v76, 0.0
    %99 = vadd.xlane.f32.xlu0 %v98
    %v100 = vpop.xlane.xlu0 %99
    %v101 = vsel %vm79, %v77, 0.0
    %102 = vadd.xlane.f32.xlu0 %v101
    %v103 = vpop.xlane.xlu0 %102
    %v104 = vrcp.pop 32.0
    %v105 = vmul.f32 %v82, %v104
    %v106 = vmul.f32 %v85, %v104
    %v107 = vmul.f32 %v88, %v104
    %v108 = vmul.f32 %v91, %v104
    %v109 = vmul.f32 %v94, %v104
    %v110 = vmul.f32 %v97, %v104
    %v111 = vmul.f32 %v100, %v104
    %v112 = vmul.f32 %v103, %v104
    %v113 = vsub.f32 %v70, %v105
    %v114 = vsub.f32 %v71, %v106
    %v115 = vsub.f32 %v72, %v107
    %v116 = vsub.f32 %v73, %v108
    %v117 = vsub.f32 %v74, %v109
    %v118 = vsub.f32 %v75, %v110
    %v119 = vsub.f32 %v76, %v111
    %v120 = vsub.f32 %v77, %v112
    %v121 = vmul.f32 %v113, %v113
    %v122 = vmul.f32 %v114, %v114
    %v123 = vmul.f32 %v115, %v115
    %v124 = vmul.f32 %v116, %v116
    %v125 = vmul.f32 %v117, %v117
    %v126 = vmul.f32 %v118, %v118
    %v127 = vmul.f32 %v119, %v119
    %v128 = vmul.f32 %v120, %v120
    %v129 = vsel %vm79, %v121, 0.0
    %130 = vadd.xlane.f32.xlu0 %v129
    %v131 = vpop.xlane.xlu0 %130
    %v132 = vsel %vm79, %v122, 0.0
    %133 = vadd.xlane.f32.xlu0 %v132
    %v134 = vpop.xlane.xlu0 %133
    %v135 = vsel %vm79, %v123, 0.0
    %136 = vadd.xlane.f32.xlu0 %v135
    %v137 = vpop.xlane.xlu0 %136
    %v138 = vsel %vm79, %v124, 0.0
    %139 = vadd.xlane.f32.xlu0 %v138
    %v140 = vpop.xlane.xlu0 %139
    %v141 = vsel %vm79, %v125, 0.0
    %142 = vadd.xlane.f32.xlu0 %v141
    %v143 = vpop.xlane.xlu0 %142
    %v144 = vsel %vm79, %v126, 0.0
    %145 = vadd.xlane.f32.xlu0 %v144
    %v146 = vpop.xlane.xlu0 %145
    %v147 = vsel %vm79, %v127, 0.0
    %148 = vadd.xlane.f32.xlu0 %v147
    %v149 = vpop.xlane.xlu0 %148
    %v150 = vsel %vm79, %v128, 0.0
    %151 = vadd.xlane.f32.xlu0 %v150
    %v152 = vpop.xlane.xlu0 %151
    %v153 = vmul.f32 %v131, %v104
    %v154 = vmul.f32 %v134, %v104
    %v155 = vmul.f32 %v137, %v104
    %v156 = vmul.f32 %v140, %v104
    %v157 = vmul.f32 %v143, %v104
    %v158 = vmul.f32 %v146, %v104
    %v159 = vmul.f32 %v149, %v104
    %v160 = vmul.f32 %v152, %v104
    %v161 = vadd.f32 %v153, 1e-05
    %v162 = vadd.f32 %v154, 1e-05
    %v163 = vadd.f32 %v155, 1e-05
    %v164 = vadd.f32 %v156, 1e-05
    %v165 = vadd.f32 %v157, 1e-05
    %v166 = vadd.f32 %v158, 1e-05
    %v167 = vadd.f32 %v159, 1e-05
    %v168 = vadd.f32 %v160, 1e-05
    %v169 = vrsqrt.pop %v161
    %v170 = vrsqrt.pop %v162
    %v171 = vrsqrt.pop %v163
    %v172 = vrsqrt.pop %v164
    %v173 = vrsqrt.pop %v165
    %v174 = vrsqrt.pop %v166
    %v175 = vrsqrt.pop %v167
    %v176 = vrsqrt.pop %v168
    %v177 = vmul.f32 %v113, %v169
    %v178 = vmul.f32 %v114, %v170
    %v179 = vmul.f32 %v115, %v171
    %v180 = vmul.f32 %v116, %v172
    %v181 = vmul.f32 %v117, %v173
    %v182 = vmul.f32 %v118, %v174
    %v183 = vmul.f32 %v119, %v175
    %v184 = vmul.f32 %v120, %v176
    %v185 = vlaneseq
    %v186 = vshrl.u32 %v185, 7
    %v187 = vsub.s32 0, %v186
    %v188 = vrot.slane %v78, %v187
    %v189 = vmul.f32 %v177, %v188
    %v190 = vmul.f32 %v178, %v188
    %v191 = vmul.f32 %v179, %v188
    %v192 = vmul.f32 %v180, %v188
    %v193 = vmul.f32 %v181, %v188
    %v194 = vmul.f32 %v182, %v188
    %v195 = vmul.f32 %v183, %v188
    %v196 = vmul.f32 %v184, %v188
    %v197 = vlaneseq
    %v198 = vshrl.u32 %v197, 7
    %v199 = vsub.s32 1, %v198
    %v200 = vrot.slane %v78, %v199
    %v201 = vadd.f32 %v189, %v200
    %v202 = vadd.f32 %v190, %v200
    %v203 = vadd.f32 %v191, %v200
    %v204 = vadd.f32 %v192, %v200
    %v205 = vadd.f32 %v193, %v200
    %v206 = vadd.f32 %v194, %v200
    %v207 = vadd.f32 %v195, %v200
    %v208 = vadd.f32 %v196, %v200
    %v209 = vpack.c.bf16 %v202, %v201
    %v210 = vpack.c.bf16 %v204, %v203
    %v211 = vpack.c.bf16 %v206, %v205
    %v212 = vpack.c.bf16 %v208, %v207
    %v213 = vld [vmem:[%s1] sm:$0xf]
    %v214 = vld [vmem:[%s1 + $0x4] sm:$0xf]
    %v215 = vld [vmem:[%s1 + $0x8] sm:$0xf]
    %v216 = vld [vmem:[%s1 + $0xc] sm:$0xf]
    %v221 = vunpack.c.l.b16 %v213
    %v222 = vunpack.c.l.b16 %v214
    %v223 = vunpack.c.l.b16 %v215
    %v224 = vunpack.c.l.b16 %v216
    %v225 = vpack.c.b16 %v222, %v221
    %v226 = vpack.c.b16 %v224, %v223
    %v230 = vsel %vm79, %v209, 0
    %v233 = vsel %vm79, %v210, 0
    %v236 = vsel %vm79, %v211, 0
    %v239 = vsel %vm79, %v212, 0
    %241 = vmatprep.subr.bf16.mxu0 0
    %242 = vmatpush1.bf16.msra.mxu0 0
    %243 = vmatprep.subr.bf16.mxu0 0
    %244 = vmatpush1.bf16.msra.mxu0 0
    %245 = vmatprep.subr.bf16.mxu0 0
    %246 = vmatpush1.bf16.msra.mxu0 0
    %247 = vmatprep.subr.bf16.mxu0 0
    %248 = vmatpush1.bf16.msra.mxu0 0
    %249 = vmatprep.subr.bf16.mxu0 0
    %250 = vmatpush1.bf16.msra.mxu0 0
    %251 = vmatprep.subr.bf16.mxu0 0
    %252 = vmatpush1.bf16.msra.mxu0 0
    %253 = vmatprep.subr.bf16.mxu0 0
    %254 = vmatpush1.bf16.msra.mxu0 %v226
    %255 = vmatprep.subr.bf16.mxu0 0
    %256 = vmatpush1.bf16.msra.mxu0 %v225
    %257 = vmatprep.subr.bf16.mxu0 0
    %258 = vmatpush2.bf16.msra.mxu0 0
    %259 = vmatprep.subr.bf16.mxu0 0
    %260 = vmatpush2.bf16.msra.mxu0 0
    %261 = vmatprep.subr.bf16.mxu0 0
    %262 = vmatpush2.bf16.msra.mxu0 0
    %263 = vmatprep.subr.bf16.mxu0 0
    %264 = vmatpush2.bf16.msra.mxu0 0
    %265 = vmatprep.subr.bf16.mxu0 0
    %266 = vmatpush2.bf16.msra.mxu0 0
    %267 = vmatprep.subr.bf16.mxu0 0
    %268 = vmatpush2.bf16.msra.mxu0 0
    %269 = vmatprep.subr.bf16.mxu0 0
    %270 = vmatpush2.bf16.msra.mxu0 0
    %271 = vmatprep.subr.bf16.mxu0 0
    %272 = vmatpush2.bf16.msra.mxu0 0
    %273 = vmatprep.mubr.bf16.mxu0 0
    %274 = vmatmul.mubr.bf16.gmra.mxu0 %v230
    %v275 = vpop.f32.mrf.mxu0
    %v276 = vadd.f32 0.0, %v275
    %v277 = vpop.f32.mrf.mxu0
    %v278 = vpop.f32.mrf.mxu0
    %v279 = vadd.f32 0.0, %v278
    %v280 = vpop.f32.mrf.mxu0
    %281 = vmatprep.mubr.bf16.mxu0 0
    %282 = vmatmul.mubr.bf16.gmra.mxu0 %v233
    %v283 = vpop.f32.mrf.mxu0
    %v284 = vadd.f32 0.0, %v283
    %v285 = vpop.f32.mrf.mxu0
    %v286 = vpop.f32.mrf.mxu0
    %v287 = vadd.f32 0.0, %v286
    %v288 = vpop.f32.mrf.mxu0
    %289 = vmatprep.mubr.bf16.mxu0 0
    %290 = vmatmul.mubr.bf16.gmra.mxu0 %v236
    %v291 = vpop.f32.mrf.mxu0
    %v292 = vadd.f32 0.0, %v291
    %v293 = vpop.f32.mrf.mxu0
    %v294 = vpop.f32.mrf.mxu0
    %v295 = vadd.f32 0.0, %v294
    %v296 = vpop.f32.mrf.mxu0
    %297 = vmatprep.mubr.bf16.mxu0 0
    %298 = vmatmul.mubr.bf16.gmra.mxu0 %v239
    %v299 = vpop.f32.mrf.mxu0
    %v300 = vadd.f32 0.0, %v299
    %v301 = vpop.f32.mrf.mxu0
    %v302 = vpop.f32.mrf.mxu0
    %v303 = vadd.f32 0.0, %v302
    %v304 = vpop.f32.mrf.mxu0
    %305 = vdwg.mxu0
    %v306 = vld [vmem:[#allocation7] sm:$0xff]
    %v307 = vpack.c.bf16 %v276, %v276
    %v308 = vpack.c.bf16 %v279, %v279
    %v309 = vpack.c.bf16 %v284, %v284
    %v310 = vpack.c.bf16 %v287, %v287
    %v311 = vpack.c.bf16 %v292, %v292
    %v312 = vpack.c.bf16 %v295, %v295
    %v313 = vpack.c.bf16 %v300, %v300
    %v314 = vpack.c.bf16 %v303, %v303
    %316 = vrot.lane.b32.xlu0 %v307, 96
    %v317 = vpop.permute.xlu0 %316
    %vm318 = vcmask 130048
    %v320 = vsel %vm318, %v307, 0
    %v323 = vsel %vm318, %v317, 0
    %325 = vmatprep.subr.bf16.mxu0 0
    %326 = vmatpush1.bf16.xpose.msra.mxu0 0
    %327 = vmatprep.subr.bf16.mxu0 0
    %328 = vmatpush1.bf16.xpose.msra.mxu0 0
    %329 = vmatprep.subr.bf16.mxu0 0
    %330 = vmatpush1.bf16.xpose.msra.mxu0 0
    %331 = vmatprep.subr.bf16.mxu0 0
    %332 = vmatpush1.bf16.xpose.msra.mxu0 0
    %333 = vmatprep.subr.bf16.mxu0 0
    %334 = vmatpush1.bf16.xpose.msra.mxu0 0
    %335 = vmatprep.subr.bf16.mxu0 0
    %336 = vmatpush1.bf16.xpose.msra.mxu0 0
    %337 = vmatprep.subr.bf16.mxu0 0
    %338 = vmatpush1.bf16.xpose.msra.mxu0 0
    %339 = vmatprep.subr.bf16.mxu0 0
    %340 = vmatpush1.bf16.xpose.msra.mxu0 %v323
    %341 = vmatprep.subr.bf16.mxu0 0
    %342 = vmatpush2.bf16.xpose.msra.mxu0 0
    %343 = vmatprep.subr.bf16.mxu0 0
    %344 = vmatpush2.bf16.xpose.msra.mxu0 0
    %345 = vmatprep.subr.bf16.mxu0 0
    %346 = vmatpush2.bf16.xpose.msra.mxu0 0
    %347 = vmatprep.subr.bf16.mxu0 0
    %348 = vmatpush2.bf16.xpose.msra.mxu0 0
    %349 = vmatprep.subr.bf16.mxu0 0
    %350 = vmatpush2.bf16.xpose.msra.mxu0 0
    %351 = vmatprep.subr.bf16.mxu0 0
    %352 = vmatpush2.bf16.xpose.msra.mxu0 0
    %353 = vmatprep.subr.bf16.mxu0 0
    %354 = vmatpush2.bf16.xpose.msra.mxu0 0
    %355 = vmatprep.subr.bf16.mxu0 0
    %356 = vmatpush2.bf16.xpose.msra.mxu0 0
    %357 = vmatprep.mubr.bf16.mxu0 0
    %358 = vmatmul.mubr.bf16.gmra.mxu0 %v320
    %v359 = vpop.f32.mrf.mxu0
    %v360 = vadd.f32 %v306, %v359
    %v361 = vpop.f32.mrf.mxu0
    %v362 = vpop.f32.mrf.mxu0
    %v363 = vpop.f32.mrf.mxu0
    %364 = vdwg.mxu0
    %366 = vrot.lane.b32.xlu0 %v308, 96
    %v367 = vpop.permute.xlu0 %366
    %v369 = vsel %vm318, %v308, 0
    %v372 = vsel %vm318, %v367, 0
    %374 = vmatprep.subr.bf16.mxu0 0
    %375 = vmatpush1.bf16.xpose.msra.mxu0 0
    %376 = vmatprep.subr.bf16.mxu0 0
    %377 = vmatpush1.bf16.xpose.msra.mxu0 0
    %378 = vmatprep.subr.bf16.mxu0 0
    %379 = vmatpush1.bf16.xpose.msra.mxu0 0
    %380 = vmatprep.subr.bf16.mxu0 0
    %381 = vmatpush1.bf16.xpose.msra.mxu0 0
    %382 = vmatprep.subr.bf16.mxu0 0
    %383 = vmatpush1.bf16.xpose.msra.mxu0 0
    %384 = vmatprep.subr.bf16.mxu0 0
    %385 = vmatpush1.bf16.xpose.msra.mxu0 0
    %386 = vmatprep.subr.bf16.mxu0 0
    %387 = vmatpush1.bf16.xpose.msra.mxu0 0
    %388 = vmatprep.subr.bf16.mxu0 0
    %389 = vmatpush1.bf16.xpose.msra.mxu0 %v372
    %390 = vmatprep.subr.bf16.mxu0 0
    %391 = vmatpush2.bf16.xpose.msra.mxu0 0
    %392 = vmatprep.subr.bf16.mxu0 0
    %393 = vmatpush2.bf16.xpose.msra.mxu0 0
    %394 = vmatprep.subr.bf16.mxu0 0
    %395 = vmatpush2.bf16.xpose.msra.mxu0 0
    %396 = vmatprep.subr.bf16.mxu0 0
    %397 = vmatpush2.bf16.xpose.msra.mxu0 0
    %398 = vmatprep.subr.bf16.mxu0 0
    %399 = vmatpush2.bf16.xpose.msra.mxu0 0
    %400 = vmatprep.subr.bf16.mxu0 0
    %401 = vmatpush2.bf16.xpose.msra.mxu0 0
    %402 = vmatprep.subr.bf16.mxu0 0
    %403 = vmatpush2.bf16.xpose.msra.mxu0 0
    %404 = vmatprep.subr.bf16.mxu0 0
    %405 = vmatpush2.bf16.xpose.msra.mxu0 0
    %406 = vmatprep.mubr.bf16.mxu0 0
    %407 = vmatmul.mubr.bf16.gmra.mxu0 %v369
    %v408 = vpop.f32.mrf.mxu0
    %v409 = vadd.f32 %v306, %v408
    %v410 = vpop.f32.mrf.mxu0
    %v411 = vpop.f32.mrf.mxu0
    %v412 = vpop.f32.mrf.mxu0
    %413 = vdwg.mxu0
    %415 = vrot.lane.b32.xlu0 %v309, 96
    %v416 = vpop.permute.xlu0 %415
    %v418 = vsel %vm318, %v309, 0
    %v421 = vsel %vm318, %v416, 0
    %423 = vmatprep.subr.bf16.mxu0 0
    %424 = vmatpush1.bf16.xpose.msra.mxu0 0
    %425 = vmatprep.subr.bf16.mxu0 0
    %426 = vmatpush1.bf16.xpose.msra.mxu0 0
    %427 = vmatprep.subr.bf16.mxu0 0
    %428 = vmatpush1.bf16.xpose.msra.mxu0 0
    %429 = vmatprep.subr.bf16.mxu0 0
    %430 = vmatpush1.bf16.xpose.msra.mxu0 0
    %431 = vmatprep.subr.bf16.mxu0 0
    %432 = vmatpush1.bf16.xpose.msra.mxu0 0
    %433 = vmatprep.subr.bf16.mxu0 0
    %434 = vmatpush1.bf16.xpose.msra.mxu0 0
    %435 = vmatprep.subr.bf16.mxu0 0
    %436 = vmatpush1.bf16.xpose.msra.mxu0 0
    %437 = vmatprep.subr.bf16.mxu0 0
    %438 = vmatpush1.bf16.xpose.msra.mxu0 %v421
    %439 = vmatprep.subr.bf16.mxu0 0
    %440 = vmatpush2.bf16.xpose.msra.mxu0 0
    %441 = vmatprep.subr.bf16.mxu0 0
    %442 = vmatpush2.bf16.xpose.msra.mxu0 0
    %443 = vmatprep.subr.bf16.mxu0 0
    %444 = vmatpush2.bf16.xpose.msra.mxu0 0
    %445 = vmatprep.subr.bf16.mxu0 0
    %446 = vmatpush2.bf16.xpose.msra.mxu0 0
    %447 = vmatprep.subr.bf16.mxu0 0
    %448 = vmatpush2.bf16.xpose.msra.mxu0 0
    %449 = vmatprep.subr.bf16.mxu0 0
    %450 = vmatpush2.bf16.xpose.msra.mxu0 0
    %451 = vmatprep.subr.bf16.mxu0 0
    %452 = vmatpush2.bf16.xpose.msra.mxu0 0
    %453 = vmatprep.subr.bf16.mxu0 0
    %454 = vmatpush2.bf16.xpose.msra.mxu0 0
    %455 = vmatprep.mubr.bf16.mxu0 0
    %456 = vmatmul.mubr.bf16.gmra.mxu0 %v418
    %v457 = vpop.f32.mrf.mxu0
    %v458 = vadd.f32 %v306, %v457
    %v459 = vpop.f32.mrf.mxu0
    %v460 = vpop.f32.mrf.mxu0
    %v461 = vpop.f32.mrf.mxu0
    %462 = vdwg.mxu0
    %464 = vrot.lane.b32.xlu0 %v310, 96
    %v465 = vpop.permute.xlu0 %464
    %v467 = vsel %vm318, %v310, 0
    %v470 = vsel %vm318, %v465, 0
    %472 = vmatprep.subr.bf16.mxu0 0
    %473 = vmatpush1.bf16.xpose.msra.mxu0 0
    %474 = vmatprep.subr.bf16.mxu0 0
    %475 = vmatpush1.bf16.xpose.msra.mxu0 0
    %476 = vmatprep.subr.bf16.mxu0 0
    %477 = vmatpush1.bf16.xpose.msra.mxu0 0
    %478 = vmatprep.subr.bf16.mxu0 0
    %479 = vmatpush1.bf16.xpose.msra.mxu0 0
    %480 = vmatprep.subr.bf16.mxu0 0
    %481 = vmatpush1.bf16.xpose.msra.mxu0 0
    %482 = vmatprep.subr.bf16.mxu0 0
    %483 = vmatpush1.bf16.xpose.msra.mxu0 0
    %484 = vmatprep.subr.bf16.mxu0 0
    %485 = vmatpush1.bf16.xpose.msra.mxu0 0
    %486 = vmatprep.subr.bf16.mxu0 0
    %487 = vmatpush1.bf16.xpose.msra.mxu0 %v470
    %488 = vmatprep.subr.bf16.mxu0 0
    %489 = vmatpush2.bf16.xpose.msra.mxu0 0
    %490 = vmatprep.subr.bf16.mxu0 0
    %491 = vmatpush2.bf16.xpose.msra.mxu0 0
    %492 = vmatprep.subr.bf16.mxu0 0
    %493 = vmatpush2.bf16.xpose.msra.mxu0 0
    %494 = vmatprep.subr.bf16.mxu0 0
    %495 = vmatpush2.bf16.xpose.msra.mxu0 0
    %496 = vmatprep.subr.bf16.mxu0 0
    %497 = vmatpush2.bf16.xpose.msra.mxu0 0
    %498 = vmatprep.subr.bf16.mxu0 0
    %499 = vmatpush2.bf16.xpose.msra.mxu0 0
    %500 = vmatprep.subr.bf16.mxu0 0
    %501 = vmatpush2.bf16.xpose.msra.mxu0 0
    %502 = vmatprep.subr.bf16.mxu0 0
    %503 = vmatpush2.bf16.xpose.msra.mxu0 0
    %504 = vmatprep.mubr.bf16.mxu0 0
    %505 = vmatmul.mubr.bf16.gmra.mxu0 %v467
    %v506 = vpop.f32.mrf.mxu0
    %v507 = vadd.f32 %v306, %v506
    %v508 = vpop.f32.mrf.mxu0
    %v509 = vpop.f32.mrf.mxu0
    %v510 = vpop.f32.mrf.mxu0
    %511 = vdwg.mxu0
    %513 = vrot.lane.b32.xlu0 %v311, 96
    %v514 = vpop.permute.xlu0 %513
    %v516 = vsel %vm318, %v311, 0
    %v519 = vsel %vm318, %v514, 0
    %521 = vmatprep.subr.bf16.mxu0 0
    %522 = vmatpush1.bf16.xpose.msra.mxu0 0
    %523 = vmatprep.subr.bf16.mxu0 0
    %524 = vmatpush1.bf16.xpose.msra.mxu0 0
    %525 = vmatprep.subr.bf16.mxu0 0
    %526 = vmatpush1.bf16.xpose.msra.mxu0 0
    %527 = vmatprep.subr.bf16.mxu0 0
    %528 = vmatpush1.bf16.xpose.msra.mxu0 0
    %529 = vmatprep.subr.bf16.mxu0 0
    %530 = vmatpush1.bf16.xpose.msra.mxu0 0
    %531 = vmatprep.subr.bf16.mxu0 0
    %532 = vmatpush1.bf16.xpose.msra.mxu0 0
    %533 = vmatprep.subr.bf16.mxu0 0
    %534 = vmatpush1.bf16.xpose.msra.mxu0 0
    %535 = vmatprep.subr.bf16.mxu0 0
    %536 = vmatpush1.bf16.xpose.msra.mxu0 %v519
    %537 = vmatprep.subr.bf16.mxu0 0
    %538 = vmatpush2.bf16.xpose.msra.mxu0 0
    %539 = vmatprep.subr.bf16.mxu0 0
    %540 = vmatpush2.bf16.xpose.msra.mxu0 0
    %541 = vmatprep.subr.bf16.mxu0 0
    %542 = vmatpush2.bf16.xpose.msra.mxu0 0
    %543 = vmatprep.subr.bf16.mxu0 0
    %544 = vmatpush2.bf16.xpose.msra.mxu0 0
    %545 = vmatprep.subr.bf16.mxu0 0
    %546 = vmatpush2.bf16.xpose.msra.mxu0 0
    %547 = vmatprep.subr.bf16.mxu0 0
    %548 = vmatpush2.bf16.xpose.msra.mxu0 0
    %549 = vmatprep.subr.bf16.mxu0 0
    %550 = vmatpush2.bf16.xpose.msra.mxu0 0
    %551 = vmatprep.subr.bf16.mxu0 0
    %552 = vmatpush2.bf16.xpose.msra.mxu0 0
    %553 = vmatprep.mubr.bf16.mxu0 0
    %554 = vmatmul.mubr.bf16.gmra.mxu0 %v516
    %v555 = vpop.f32.mrf.mxu0
    %v556 = vadd.f32 %v306, %v555
    %v557 = vpop.f32.mrf.mxu0
    %v558 = vpop.f32.mrf.mxu0
    %v559 = vpop.f32.mrf.mxu0
    %560 = vdwg.mxu0
    %562 = vrot.lane.b32.xlu0 %v312, 96
    %v563 = vpop.permute.xlu0 %562
    %v565 = vsel %vm318, %v312, 0
    %v568 = vsel %vm318, %v563, 0
    %570 = vmatprep.subr.bf16.mxu0 0
    %571 = vmatpush1.bf16.xpose.msra.mxu0 0
    %572 = vmatprep.subr.bf16.mxu0 0
    %573 = vmatpush1.bf16.xpose.msra.mxu0 0
    %574 = vmatprep.subr.bf16.mxu0 0
    %575 = vmatpush1.bf16.xpose.msra.mxu0 0
    %576 = vmatprep.subr.bf16.mxu0 0
    %577 = vmatpush1.bf16.xpose.msra.mxu0 0
    %578 = vmatprep.subr.bf16.mxu0 0
    %579 = vmatpush1.bf16.xpose.msra.mxu0 0
    %580 = vmatprep.subr.bf16.mxu0 0
    %581 = vmatpush1.bf16.xpose.msra.mxu0 0
    %582 = vmatprep.subr.bf16.mxu0 0
    %583 = vmatpush1.bf16.xpose.msra.mxu0 0
    %584 = vmatprep.subr.bf16.mxu0 0
    %585 = vmatpush1.bf16.xpose.msra.mxu0 %v568
    %586 = vmatprep.subr.bf16.mxu0 0
    %587 = vmatpush2.bf16.xpose.msra.mxu0 0
    %588 = vmatprep.subr.bf16.mxu0 0
    %589 = vmatpush2.bf16.xpose.msra.mxu0 0
    %590 = vmatprep.subr.bf16.mxu0 0
    %591 = vmatpush2.bf16.xpose.msra.mxu0 0
    %592 = vmatprep.subr.bf16.mxu0 0
    %593 = vmatpush2.bf16.xpose.msra.mxu0 0
    %594 = vmatprep.subr.bf16.mxu0 0
    %595 = vmatpush2.bf16.xpose.msra.mxu0 0
    %596 = vmatprep.subr.bf16.mxu0 0
    %597 = vmatpush2.bf16.xpose.msra.mxu0 0
    %598 = vmatprep.subr.bf16.mxu0 0
    %599 = vmatpush2.bf16.xpose.msra.mxu0 0
    %600 = vmatprep.subr.bf16.mxu0 0
    %601 = vmatpush2.bf16.xpose.msra.mxu0 0
    %602 = vmatprep.mubr.bf16.mxu0 0
    %603 = vmatmul.mubr.bf16.gmra.mxu0 %v565
    %v604 = vpop.f32.mrf.mxu0
    %v605 = vadd.f32 %v306, %v604
    %v606 = vpop.f32.mrf.mxu0
    %v607 = vpop.f32.mrf.mxu0
    %v608 = vpop.f32.mrf.mxu0
    %609 = vdwg.mxu0
    %611 = vrot.lane.b32.xlu0 %v313, 96
    %v612 = vpop.permute.xlu0 %611
    %v614 = vsel %vm318, %v313, 0
    %v617 = vsel %vm318, %v612, 0
    %619 = vmatprep.subr.bf16.mxu0 0
    %620 = vmatpush1.bf16.xpose.msra.mxu0 0
    %621 = vmatprep.subr.bf16.mxu0 0
    %622 = vmatpush1.bf16.xpose.msra.mxu0 0
    %623 = vmatprep.subr.bf16.mxu0 0
    %624 = vmatpush1.bf16.xpose.msra.mxu0 0
    %625 = vmatprep.subr.bf16.mxu0 0
    %626 = vmatpush1.bf16.xpose.msra.mxu0 0
    %627 = vmatprep.subr.bf16.mxu0 0
    %628 = vmatpush1.bf16.xpose.msra.mxu0 0
    %629 = vmatprep.subr.bf16.mxu0 0
    %630 = vmatpush1.bf16.xpose.msra.mxu0 0
    %631 = vmatprep.subr.bf16.mxu0 0
    %632 = vmatpush1.bf16.xpose.msra.mxu0 0
    %633 = vmatprep.subr.bf16.mxu0 0
    %634 = vmatpush1.bf16.xpose.msra.mxu0 %v617
    %635 = vmatprep.subr.bf16.mxu0 0
    %636 = vmatpush2.bf16.xpose.msra.mxu0 0
    %637 = vmatprep.subr.bf16.mxu0 0
    %638 = vmatpush2.bf16.xpose.msra.mxu0 0
    %639 = vmatprep.subr.bf16.mxu0 0
    %640 = vmatpush2.bf16.xpose.msra.mxu0 0
    %641 = vmatprep.subr.bf16.mxu0 0
    %642 = vmatpush2.bf16.xpose.msra.mxu0 0
    %643 = vmatprep.subr.bf16.mxu0 0
    %644 = vmatpush2.bf16.xpose.msra.mxu0 0
    %645 = vmatprep.subr.bf16.mxu0 0
    %646 = vmatpush2.bf16.xpose.msra.mxu0 0
    %647 = vmatprep.subr.bf16.mxu0 0
    %648 = vmatpush2.bf16.xpose.msra.mxu0 0
    %649 = vmatprep.subr.bf16.mxu0 0
    %650 = vmatpush2.bf16.xpose.msra.mxu0 0
    %651 = vmatprep.mubr.bf16.mxu0 0
    %652 = vmatmul.mubr.bf16.gmra.mxu0 %v614
    %v653 = vpop.f32.mrf.mxu0
    %v654 = vadd.f32 %v306, %v653
    %v655 = vpop.f32.mrf.mxu0
    %v656 = vpop.f32.mrf.mxu0
    %v657 = vpop.f32.mrf.mxu0
    %658 = vdwg.mxu0
    %660 = vrot.lane.b32.xlu0 %v314, 96
    %v661 = vpop.permute.xlu0 %660
    %v663 = vsel %vm318, %v314, 0
    %v666 = vsel %vm318, %v661, 0
    %668 = vmatprep.subr.bf16.mxu0 0
    %669 = vmatpush1.bf16.xpose.msra.mxu0 0
    %670 = vmatprep.subr.bf16.mxu0 0
    %671 = vmatpush1.bf16.xpose.msra.mxu0 0
    %672 = vmatprep.subr.bf16.mxu0 0
    %673 = vmatpush1.bf16.xpose.msra.mxu0 0
    %674 = vmatprep.subr.bf16.mxu0 0
    %675 = vmatpush1.bf16.xpose.msra.mxu0 0
    %676 = vmatprep.subr.bf16.mxu0 0
    %677 = vmatpush1.bf16.xpose.msra.mxu0 0
    %678 = vmatprep.subr.bf16.mxu0 0
    %679 = vmatpush1.bf16.xpose.msra.mxu0 0
    %680 = vmatprep.subr.bf16.mxu0 0
    %681 = vmatpush1.bf16.xpose.msra.mxu0 0
    %682 = vmatprep.subr.bf16.mxu0 0
    %683 = vmatpush1.bf16.xpose.msra.mxu0 %v666
    %684 = vmatprep.subr.bf16.mxu0 0
    %685 = vmatpush2.bf16.xpose.msra.mxu0 0
    %686 = vmatprep.subr.bf16.mxu0 0
    %687 = vmatpush2.bf16.xpose.msra.mxu0 0
    %688 = vmatprep.subr.bf16.mxu0 0
    %689 = vmatpush2.bf16.xpose.msra.mxu0 0
    %690 = vmatprep.subr.bf16.mxu0 0
    %691 = vmatpush2.bf16.xpose.msra.mxu0 0
    %692 = vmatprep.subr.bf16.mxu0 0
    %693 = vmatpush2.bf16.xpose.msra.mxu0 0
    %694 = vmatprep.subr.bf16.mxu0 0
    %695 = vmatpush2.bf16.xpose.msra.mxu0 0
    %696 = vmatprep.subr.bf16.mxu0 0
    %697 = vmatpush2.bf16.xpose.msra.mxu0 0
    %698 = vmatprep.subr.bf16.mxu0 0
    %699 = vmatpush2.bf16.xpose.msra.mxu0 0
    %700 = vmatprep.mubr.bf16.mxu0 0
    %701 = vmatmul.mubr.bf16.gmra.mxu0 %v663
    %v702 = vpop.f32.mrf.mxu0
    %v703 = vadd.f32 %v306, %v702
    %v704 = vpop.f32.mrf.mxu0
    %v705 = vpop.f32.mrf.mxu0
    %v706 = vpop.f32.mrf.mxu0
    %707 = vdwg.mxu0
    %vm708 = vcmask 64512
    %v709 = vsel %vm708, %v360, -inf
    %710 = vmax.xlane.f32.xlu0 %v709
    %v711 = vpop.xlane.xlu0 %710
    %v712 = vsel %vm708, %v409, -inf
    %713 = vmax.xlane.f32.xlu0 %v712
    %v714 = vpop.xlane.xlu0 %713
    %v715 = vsel %vm708, %v458, -inf
    %716 = vmax.xlane.f32.xlu0 %v715
    %v717 = vpop.xlane.xlu0 %716
    %v718 = vsel %vm708, %v507, -inf
    %719 = vmax.xlane.f32.xlu0 %v718
    %v720 = vpop.xlane.xlu0 %719
    %v721 = vsel %vm708, %v556, -inf
    %722 = vmax.xlane.f32.xlu0 %v721
    %v723 = vpop.xlane.xlu0 %722
    %v724 = vsel %vm708, %v605, -inf
    %725 = vmax.xlane.f32.xlu0 %v724
    %v726 = vpop.xlane.xlu0 %725
    %v727 = vsel %vm708, %v654, -inf
    %728 = vmax.xlane.f32.xlu0 %v727
    %v729 = vpop.xlane.xlu0 %728
    %v730 = vsel %vm708, %v703, -inf
    %731 = vmax.xlane.f32.xlu0 %v730
    %v732 = vpop.xlane.xlu0 %731
    %v733 = vsub.f32 %v360, %v711
    %v734 = vsub.f32 %v409, %v714
    %v735 = vsub.f32 %v458, %v717
    %v736 = vsub.f32 %v507, %v720
    %v737 = vsub.f32 %v556, %v723
    %v738 = vsub.f32 %v605, %v726
    %v739 = vsub.f32 %v654, %v729
    %v740 = vsub.f32 %v703, %v732
    %v741 = vmul.f32 %v733, 1.442695
    %v742 = vpow.pop %v741
    %v743 = vmul.f32 %v734, 1.442695
    %v744 = vpow.pop %v743
    %v745 = vmul.f32 %v735, 1.442695
    %v746 = vpow.pop %v745
    %v747 = vmul.f32 %v736, 1.442695
    %v748 = vpow.pop %v747
    %v749 = vmul.f32 %v737, 1.442695
    %v750 = vpow.pop %v749
    %v751 = vmul.f32 %v738, 1.442695
    %v752 = vpow.pop %v751
    %v753 = vmul.f32 %v739, 1.442695
    %v754 = vpow.pop %v753
    %v755 = vmul.f32 %v740, 1.442695
    %v756 = vpow.pop %v755
    %v757 = vsel %vm708, %v742, 0.0
    %758 = vadd.xlane.f32.xlu0 %v757
    %v759 = vpop.xlane.xlu0 %758
    %v760 = vsel %vm708, %v744, 0.0
    %761 = vadd.xlane.f32.xlu0 %v760
    %v762 = vpop.xlane.xlu0 %761
    %v763 = vsel %vm708, %v746, 0.0
    %764 = vadd.xlane.f32.xlu0 %v763
    %v765 = vpop.xlane.xlu0 %764
    %v766 = vsel %vm708, %v748, 0.0
    %767 = vadd.xlane.f32.xlu0 %v766
    %v768 = vpop.xlane.xlu0 %767
    %v769 = vsel %vm708, %v750, 0.0
    %770 = vadd.xlane.f32.xlu0 %v769
    %v771 = vpop.xlane.xlu0 %770
    %v772 = vsel %vm708, %v752, 0.0
    %773 = vadd.xlane.f32.xlu0 %v772
    %v774 = vpop.xlane.xlu0 %773
    %v775 = vsel %vm708, %v754, 0.0
    %776 = vadd.xlane.f32.xlu0 %v775
    %v777 = vpop.xlane.xlu0 %776
    %v778 = vsel %vm708, %v756, 0.0
    %779 = vadd.xlane.f32.xlu0 %v778
    %v780 = vpop.xlane.xlu0 %779
    %v781 = vrcp.pop %v759
    %v782 = vrcp.pop %v762
    %v783 = vrcp.pop %v765
    %v784 = vrcp.pop %v768
    %v785 = vrcp.pop %v771
    %v786 = vrcp.pop %v774
    %v787 = vrcp.pop %v777
    %v788 = vrcp.pop %v780
    %v789 = vmul.f32 %v742, %v781
    %v790 = vmul.f32 %v744, %v782
    %v791 = vmul.f32 %v746, %v783
    %v792 = vmul.f32 %v748, %v784
    %v793 = vmul.f32 %v750, %v785
    %v794 = vmul.f32 %v752, %v786
    %v795 = vmul.f32 %v754, %v787
    %v796 = vmul.f32 %v756, %v788
    %v797 = vpack.c.bf16 %v789, %v789
    %v798 = vpack.c.bf16 %v790, %v790
    %v799 = vpack.c.bf16 %v791, %v791
    %v800 = vpack.c.bf16 %v792, %v792
    %v801 = vpack.c.bf16 %v793, %v793
    %v802 = vpack.c.bf16 %v794, %v794
    %v803 = vpack.c.bf16 %v795, %v795
    %v804 = vpack.c.bf16 %v796, %v796
    %805 = vrot.lane.b32.xlu0 %v307, 64
    %v806 = vpop.permute.xlu0 %805
    %v808 = vsel %vm708, %v797, 0
    %vm810 = vcmask 1043456
    %v812 = vsel %vm810, %v806, 0
    %814 = vmatprep.subr.bf16.mxu0 0
    %815 = vmatpush1.bf16.msra.mxu0 0
    %816 = vmatprep.subr.bf16.mxu0 0
    %817 = vmatpush1.bf16.msra.mxu0 0
    %818 = vmatprep.subr.bf16.mxu0 0
    %819 = vmatpush1.bf16.msra.mxu0 0
    %820 = vmatprep.subr.bf16.mxu0 0
    %821 = vmatpush1.bf16.msra.mxu0 0
    %822 = vmatprep.subr.bf16.mxu0 0
    %823 = vmatpush1.bf16.msra.mxu0 0
    %824 = vmatprep.subr.bf16.mxu0 0
    %825 = vmatpush1.bf16.msra.mxu0 0
    %826 = vmatprep.subr.bf16.mxu0 0
    %827 = vmatpush1.bf16.msra.mxu0 0
    %828 = vmatprep.subr.bf16.mxu0 0
    %829 = vmatpush1.bf16.msra.mxu0 %v812
    %830 = vmatprep.subr.bf16.mxu0 0
    %831 = vmatpush2.bf16.msra.mxu0 0
    %832 = vmatprep.subr.bf16.mxu0 0
    %833 = vmatpush2.bf16.msra.mxu0 0
    %834 = vmatprep.subr.bf16.mxu0 0
    %835 = vmatpush2.bf16.msra.mxu0 0
    %836 = vmatprep.subr.bf16.mxu0 0
    %837 = vmatpush2.bf16.msra.mxu0 0
    %838 = vmatprep.subr.bf16.mxu0 0
    %839 = vmatpush2.bf16.msra.mxu0 0
    %840 = vmatprep.subr.bf16.mxu0 0
    %841 = vmatpush2.bf16.msra.mxu0 0
    %842 = vmatprep.subr.bf16.mxu0 0
    %843 = vmatpush2.bf16.msra.mxu0 0
    %844 = vmatprep.subr.bf16.mxu0 0
    %845 = vmatpush2.bf16.msra.mxu0 0
    %846 = vmatprep.mubr.bf16.mxu0 0
    %847 = vmatmul.mubr.bf16.gmra.mxu0 %v808
    %v848 = vpop.f32.mrf.mxu0
    %v849 = vadd.f32 0.0, %v848
    %v850 = vpop.f32.mrf.mxu0
    %v851 = vpop.f32.mrf.mxu0
    %v852 = vpop.f32.mrf.mxu0
    %853 = vdwg.mxu0
    %854 = vrot.lane.b32.xlu0 %v308, 64
    %v855 = vpop.permute.xlu0 %854
    %v857 = vsel %vm708, %v798, 0
    %v860 = vsel %vm810, %v855, 0
    %862 = vmatprep.subr.bf16.mxu0 0
    %863 = vmatpush1.bf16.msra.mxu0 0
    %864 = vmatprep.subr.bf16.mxu0 0
    %865 = vmatpush1.bf16.msra.mxu0 0
    %866 = vmatprep.subr.bf16.mxu0 0
    %867 = vmatpush1.bf16.msra.mxu0 0
    %868 = vmatprep.subr.bf16.mxu0 0
    %869 = vmatpush1.bf16.msra.mxu0 0
    %870 = vmatprep.subr.bf16.mxu0 0
    %871 = vmatpush1.bf16.msra.mxu0 0
    %872 = vmatprep.subr.bf16.mxu0 0
    %873 = vmatpush1.bf16.msra.mxu0 0
    %874 = vmatprep.subr.bf16.mxu0 0
    %875 = vmatpush1.bf16.msra.mxu0 0
    %876 = vmatprep.subr.bf16.mxu0 0
    %877 = vmatpush1.bf16.msra.mxu0 %v860
    %878 = vmatprep.subr.bf16.mxu0 0
    %879 = vmatpush2.bf16.msra.mxu0 0
    %880 = vmatprep.subr.bf16.mxu0 0
    %881 = vmatpush2.bf16.msra.mxu0 0
    %882 = vmatprep.subr.bf16.mxu0 0
    %883 = vmatpush2.bf16.msra.mxu0 0
    %884 = vmatprep.subr.bf16.mxu0 0
    %885 = vmatpush2.bf16.msra.mxu0 0
    %886 = vmatprep.subr.bf16.mxu0 0
    %887 = vmatpush2.bf16.msra.mxu0 0
    %888 = vmatprep.subr.bf16.mxu0 0
    %889 = vmatpush2.bf16.msra.mxu0 0
    %890 = vmatprep.subr.bf16.mxu0 0
    %891 = vmatpush2.bf16.msra.mxu0 0
    %892 = vmatprep.subr.bf16.mxu0 0
    %893 = vmatpush2.bf16.msra.mxu0 0
    %894 = vmatprep.mubr.bf16.mxu0 0
    %895 = vmatmul.mubr.bf16.gmra.mxu0 %v857
    %v896 = vpop.f32.mrf.mxu0
    %v897 = vadd.f32 0.0, %v896
    %v898 = vpop.f32.mrf.mxu0
    %v899 = vpop.f32.mrf.mxu0
    %v900 = vpop.f32.mrf.mxu0
    %901 = vdwg.mxu0
    %902 = vrot.lane.b32.xlu0 %v309, 64
    %v903 = vpop.permute.xlu0 %902
    %v905 = vsel %vm708, %v799, 0
    %v908 = vsel %vm810, %v903, 0
    %910 = vmatprep.subr.bf16.mxu0 0
    %911 = vmatpush1.bf16.msra.mxu0 0
    %912 = vmatprep.subr.bf16.mxu0 0
    %913 = vmatpush1.bf16.msra.mxu0 0
    %914 = vmatprep.subr.bf16.mxu0 0
    %915 = vmatpush1.bf16.msra.mxu0 0
    %916 = vmatprep.subr.bf16.mxu0 0
    %917 = vmatpush1.bf16.msra.mxu0 0
    %918 = vmatprep.subr.bf16.mxu0 0
    %919 = vmatpush1.bf16.msra.mxu0 0
    %920 = vmatprep.subr.bf16.mxu0 0
    %921 = vmatpush1.bf16.msra.mxu0 0
    %922 = vmatprep.subr.bf16.mxu0 0
    %923 = vmatpush1.bf16.msra.mxu0 0
    %924 = vmatprep.subr.bf16.mxu0 0
    %925 = vmatpush1.bf16.msra.mxu0 %v908
    %926 = vmatprep.subr.bf16.mxu0 0
    %927 = vmatpush2.bf16.msra.mxu0 0
    %928 = vmatprep.subr.bf16.mxu0 0
    %929 = vmatpush2.bf16.msra.mxu0 0
    %930 = vmatprep.subr.bf16.mxu0 0
    %931 = vmatpush2.bf16.msra.mxu0 0
    %932 = vmatprep.subr.bf16.mxu0 0
    %933 = vmatpush2.bf16.msra.mxu0 0
    %934 = vmatprep.subr.bf16.mxu0 0
    %935 = vmatpush2.bf16.msra.mxu0 0
    %936 = vmatprep.subr.bf16.mxu0 0
    %937 = vmatpush2.bf16.msra.mxu0 0
    %938 = vmatprep.subr.bf16.mxu0 0
    %939 = vmatpush2.bf16.msra.mxu0 0
    %940 = vmatprep.subr.bf16.mxu0 0
    %941 = vmatpush2.bf16.msra.mxu0 0
    %942 = vmatprep.mubr.bf16.mxu0 0
    %943 = vmatmul.mubr.bf16.gmra.mxu0 %v905
    %v944 = vpop.f32.mrf.mxu0
    %v945 = vadd.f32 0.0, %v944
    %v946 = vpop.f32.mrf.mxu0
    %v947 = vpop.f32.mrf.mxu0
    %v948 = vpop.f32.mrf.mxu0
    %949 = vdwg.mxu0
    %950 = vrot.lane.b32.xlu0 %v310, 64
    %v951 = vpop.permute.xlu0 %950
    %v953 = vsel %vm708, %v800, 0
    %v956 = vsel %vm810, %v951, 0
    %958 = vmatprep.subr.bf16.mxu0 0
    %959 = vmatpush1.bf16.msra.mxu0 0
    %960 = vmatprep.subr.bf16.mxu0 0
    %961 = vmatpush1.bf16.msra.mxu0 0
    %962 = vmatprep.subr.bf16.mxu0 0
    %963 = vmatpush1.bf16.msra.mxu0 0
    %964 = vmatprep.subr.bf16.mxu0 0
    %965 = vmatpush1.bf16.msra.mxu0 0
    %966 = vmatprep.subr.bf16.mxu0 0
    %967 = vmatpush1.bf16.msra.mxu0 0
    %968 = vmatprep.subr.bf16.mxu0 0
    %969 = vmatpush1.bf16.msra.mxu0 0
    %970 = vmatprep.subr.bf16.mxu0 0
    %971 = vmatpush1.bf16.msra.mxu0 0
    %972 = vmatprep.subr.bf16.mxu0 0
    %973 = vmatpush1.bf16.msra.mxu0 %v956
    %974 = vmatprep.subr.bf16.mxu0 0
    %975 = vmatpush2.bf16.msra.mxu0 0
    %976 = vmatprep.subr.bf16.mxu0 0
    %977 = vmatpush2.bf16.msra.mxu0 0
    %978 = vmatprep.subr.bf16.mxu0 0
    %979 = vmatpush2.bf16.msra.mxu0 0
    %980 = vmatprep.subr.bf16.mxu0 0
    %981 = vmatpush2.bf16.msra.mxu0 0
    %982 = vmatprep.subr.bf16.mxu0 0
    %983 = vmatpush2.bf16.msra.mxu0 0
    %984 = vmatprep.subr.bf16.mxu0 0
    %985 = vmatpush2.bf16.msra.mxu0 0
    %986 = vmatprep.subr.bf16.mxu0 0
    %987 = vmatpush2.bf16.msra.mxu0 0
    %988 = vmatprep.subr.bf16.mxu0 0
    %989 = vmatpush2.bf16.msra.mxu0 0
    %990 = vmatprep.mubr.bf16.mxu0 0
    %991 = vmatmul.mubr.bf16.gmra.mxu0 %v953
    %v992 = vpop.f32.mrf.mxu0
    %v993 = vadd.f32 0.0, %v992
    %v994 = vpop.f32.mrf.mxu0
    %v995 = vpop.f32.mrf.mxu0
    %v996 = vpop.f32.mrf.mxu0
    %997 = vdwg.mxu0
    %998 = vrot.lane.b32.xlu0 %v311, 64
    %v999 = vpop.permute.xlu0 %998
    %v1001 = vsel %vm708, %v801, 0
    %v1004 = vsel %vm810, %v999, 0
    %1006 = vmatprep.subr.bf16.mxu0 0
    %1007 = vmatpush1.bf16.msra.mxu0 0
    %1008 = vmatprep.subr.bf16.mxu0 0
    %1009 = vmatpush1.bf16.msra.mxu0 0
    %1010 = vmatprep.subr.bf16.mxu0 0
    %1011 = vmatpush1.bf16.msra.mxu0 0
    %1012 = vmatprep.subr.bf16.mxu0 0
    %1013 = vmatpush1.bf16.msra.mxu0 0
    %1014 = vmatprep.subr.bf16.mxu0 0
    %1015 = vmatpush1.bf16.msra.mxu0 0
    %1016 = vmatprep.subr.bf16.mxu0 0
    %1017 = vmatpush1.bf16.msra.mxu0 0
    %1018 = vmatprep.subr.bf16.mxu0 0
    %1019 = vmatpush1.bf16.msra.mxu0 0
    %1020 = vmatprep.subr.bf16.mxu0 0
    %1021 = vmatpush1.bf16.msra.mxu0 %v1004
    %1022 = vmatprep.subr.bf16.mxu0 0
    %1023 = vmatpush2.bf16.msra.mxu0 0
    %1024 = vmatprep.subr.bf16.mxu0 0
    %1025 = vmatpush2.bf16.msra.mxu0 0
    %1026 = vmatprep.subr.bf16.mxu0 0
    %1027 = vmatpush2.bf16.msra.mxu0 0
    %1028 = vmatprep.subr.bf16.mxu0 0
    %1029 = vmatpush2.bf16.msra.mxu0 0
    %1030 = vmatprep.subr.bf16.mxu0 0
    %1031 = vmatpush2.bf16.msra.mxu0 0
    %1032 = vmatprep.subr.bf16.mxu0 0
    %1033 = vmatpush2.bf16.msra.mxu0 0
    %1034 = vmatprep.subr.bf16.mxu0 0
    %1035 = vmatpush2.bf16.msra.mxu0 0
    %1036 = vmatprep.subr.bf16.mxu0 0
    %1037 = vmatpush2.bf16.msra.mxu0 0
    %1038 = vmatprep.mubr.bf16.mxu0 0
    %1039 = vmatmul.mubr.bf16.gmra.mxu0 %v1001
    %v1040 = vpop.f32.mrf.mxu0
    %v1041 = vadd.f32 0.0, %v1040
    %v1042 = vpop.f32.mrf.mxu0
    %v1043 = vpop.f32.mrf.mxu0
    %v1044 = vpop.f32.mrf.mxu0
    %1045 = vdwg.mxu0
    %1046 = vrot.lane.b32.xlu0 %v312, 64
    %v1047 = vpop.permute.xlu0 %1046
    %v1049 = vsel %vm708, %v802, 0
    %v1052 = vsel %vm810, %v1047, 0
    %1054 = vmatprep.subr.bf16.mxu0 0
    %1055 = vmatpush1.bf16.msra.mxu0 0
    %1056 = vmatprep.subr.bf16.mxu0 0
    %1057 = vmatpush1.bf16.msra.mxu0 0
    %1058 = vmatprep.subr.bf16.mxu0 0
    %1059 = vmatpush1.bf16.msra.mxu0 0
    %1060 = vmatprep.subr.bf16.mxu0 0
    %1061 = vmatpush1.bf16.msra.mxu0 0
    %1062 = vmatprep.subr.bf16.mxu0 0
    %1063 = vmatpush1.bf16.msra.mxu0 0
    %1064 = vmatprep.subr.bf16.mxu0 0
    %1065 = vmatpush1.bf16.msra.mxu0 0
    %1066 = vmatprep.subr.bf16.mxu0 0
    %1067 = vmatpush1.bf16.msra.mxu0 0
    %1068 = vmatprep.subr.bf16.mxu0 0
    %1069 = vmatpush1.bf16.msra.mxu0 %v1052
    %1070 = vmatprep.subr.bf16.mxu0 0
    %1071 = vmatpush2.bf16.msra.mxu0 0
    %1072 = vmatprep.subr.bf16.mxu0 0
    %1073 = vmatpush2.bf16.msra.mxu0 0
    %1074 = vmatprep.subr.bf16.mxu0 0
    %1075 = vmatpush2.bf16.msra.mxu0 0
    %1076 = vmatprep.subr.bf16.mxu0 0
    %1077 = vmatpush2.bf16.msra.mxu0 0
    %1078 = vmatprep.subr.bf16.mxu0 0
    %1079 = vmatpush2.bf16.msra.mxu0 0
    %1080 = vmatprep.subr.bf16.mxu0 0
    %1081 = vmatpush2.bf16.msra.mxu0 0
    %1082 = vmatprep.subr.bf16.mxu0 0
    %1083 = vmatpush2.bf16.msra.mxu0 0
    %1084 = vmatprep.subr.bf16.mxu0 0
    %1085 = vmatpush2.bf16.msra.mxu0 0
    %1086 = vmatprep.mubr.bf16.mxu0 0
    %1087 = vmatmul.mubr.bf16.gmra.mxu0 %v1049
    %v1088 = vpop.f32.mrf.mxu0
    %v1089 = vadd.f32 0.0, %v1088
    %v1090 = vpop.f32.mrf.mxu0
    %v1091 = vpop.f32.mrf.mxu0
    %v1092 = vpop.f32.mrf.mxu0
    %1093 = vdwg.mxu0
    %1094 = vrot.lane.b32.xlu0 %v313, 64
    %v1095 = vpop.permute.xlu0 %1094
    %v1097 = vsel %vm708, %v803, 0
    %v1100 = vsel %vm810, %v1095, 0
    %1102 = vmatprep.subr.bf16.mxu0 0
    %1103 = vmatpush1.bf16.msra.mxu0 0
    %1104 = vmatprep.subr.bf16.mxu0 0
    %1105 = vmatpush1.bf16.msra.mxu0 0
    %1106 = vmatprep.subr.bf16.mxu0 0
    %1107 = vmatpush1.bf16.msra.mxu0 0
    %1108 = vmatprep.subr.bf16.mxu0 0
    %1109 = vmatpush1.bf16.msra.mxu0 0
    %1110 = vmatprep.subr.bf16.mxu0 0
    %1111 = vmatpush1.bf16.msra.mxu0 0
    %1112 = vmatprep.subr.bf16.mxu0 0
    %1113 = vmatpush1.bf16.msra.mxu0 0
    %1114 = vmatprep.subr.bf16.mxu0 0
    %1115 = vmatpush1.bf16.msra.mxu0 0
    %1116 = vmatprep.subr.bf16.mxu0 0
    %1117 = vmatpush1.bf16.msra.mxu0 %v1100
    %1118 = vmatprep.subr.bf16.mxu0 0
    %1119 = vmatpush2.bf16.msra.mxu0 0
    %1120 = vmatprep.subr.bf16.mxu0 0
    %1121 = vmatpush2.bf16.msra.mxu0 0
    %1122 = vmatprep.subr.bf16.mxu0 0
    %1123 = vmatpush2.bf16.msra.mxu0 0
    %1124 = vmatprep.subr.bf16.mxu0 0
    %1125 = vmatpush2.bf16.msra.mxu0 0
    %1126 = vmatprep.subr.bf16.mxu0 0
    %1127 = vmatpush2.bf16.msra.mxu0 0
    %1128 = vmatprep.subr.bf16.mxu0 0
    %1129 = vmatpush2.bf16.msra.mxu0 0
    %1130 = vmatprep.subr.bf16.mxu0 0
    %1131 = vmatpush2.bf16.msra.mxu0 0
    %1132 = vmatprep.subr.bf16.mxu0 0
    %1133 = vmatpush2.bf16.msra.mxu0 0
    %1134 = vmatprep.mubr.bf16.mxu0 0
    %1135 = vmatmul.mubr.bf16.gmra.mxu0 %v1097
    %v1136 = vpop.f32.mrf.mxu0
    %v1137 = vadd.f32 0.0, %v1136
    %v1138 = vpop.f32.mrf.mxu0
    %v1139 = vpop.f32.mrf.mxu0
    %v1140 = vpop.f32.mrf.mxu0
    %1141 = vdwg.mxu0
    %1142 = vrot.lane.b32.xlu0 %v314, 64
    %v1143 = vpop.permute.xlu0 %1142
    %v1145 = vsel %vm708, %v804, 0
    %v1148 = vsel %vm810, %v1143, 0
    %1150 = vmatprep.subr.bf16.mxu0 0
    %1151 = vmatpush1.bf16.msra.mxu0 0
    %1152 = vmatprep.subr.bf16.mxu0 0
    %1153 = vmatpush1.bf16.msra.mxu0 0
    %1154 = vmatprep.subr.bf16.mxu0 0
    %1155 = vmatpush1.bf16.msra.mxu0 0
    %1156 = vmatprep.subr.bf16.mxu0 0
    %1157 = vmatpush1.bf16.msra.mxu0 0
    %1158 = vmatprep.subr.bf16.mxu0 0
    %1159 = vmatpush1.bf16.msra.mxu0 0
    %1160 = vmatprep.subr.bf16.mxu0 0
    %1161 = vmatpush1.bf16.msra.mxu0 0
    %1162 = vmatprep.subr.bf16.mxu0 0
    %1163 = vmatpush1.bf16.msra.mxu0 0
    %1164 = vmatprep.subr.bf16.mxu0 0
    %1165 = vmatpush1.bf16.msra.mxu0 %v1148
    %1166 = vmatprep.subr.bf16.mxu0 0
    %1167 = vmatpush2.bf16.msra.mxu0 0
    %1168 = vmatprep.subr.bf16.mxu0 0
    %1169 = vmatpush2.bf16.msra.mxu0 0
    %1170 = vmatprep.subr.bf16.mxu0 0
    %1171 = vmatpush2.bf16.msra.mxu0 0
    %1172 = vmatprep.subr.bf16.mxu0 0
    %1173 = vmatpush2.bf16.msra.mxu0 0
    %1174 = vmatprep.subr.bf16.mxu0 0
    %1175 = vmatpush2.bf16.msra.mxu0 0
    %1176 = vmatprep.subr.bf16.mxu0 0
    %1177 = vmatpush2.bf16.msra.mxu0 0
    %1178 = vmatprep.subr.bf16.mxu0 0
    %1179 = vmatpush2.bf16.msra.mxu0 0
    %1180 = vmatprep.subr.bf16.mxu0 0
    %1181 = vmatpush2.bf16.msra.mxu0 0
    %1182 = vmatprep.mubr.bf16.mxu0 0
    %1183 = vmatmul.mubr.bf16.gmra.mxu0 %v1145
    %v1184 = vpop.f32.mrf.mxu0
    %v1185 = vadd.f32 0.0, %v1184
    %v1186 = vpop.f32.mrf.mxu0
    %v1187 = vpop.f32.mrf.mxu0
    %v1188 = vpop.f32.mrf.mxu0
    %1189 = vdwg.mxu0
    %v1190 = vpack.c.bf16 %v897, %v849
    %v1191 = vpack.c.bf16 %v993, %v945
    %v1192 = vpack.c.bf16 %v1089, %v1041
    %v1193 = vpack.c.bf16 %v1185, %v1137
    %v1194 = vld [vmem:[#allocation2] sm:$0xf]
    %v1195 = vld [vmem:[#allocation2 + $0x4] sm:$0xf]
    %1196 = vrot.lane.b32.xlu0 %v307, 112
    %v1197 = vpop.permute.xlu0 %1196
    %1198 = vrot.lane.b32.xlu0 %v307, 80
    %v1199 = vpop.permute.xlu0 %1198
    %v1201 = vsel %vm318, %v1197, 0
    %v1204 = vsel %vm318, %v1199, 0
    %1206 = vmatprep.subr.bf16.mxu0 0
    %1207 = vmatpush1.bf16.xpose.msra.mxu0 0
    %1208 = vmatprep.subr.bf16.mxu0 0
    %1209 = vmatpush1.bf16.xpose.msra.mxu0 0
    %1210 = vmatprep.subr.bf16.mxu0 0
    %1211 = vmatpush1.bf16.xpose.msra.mxu0 0
    %1212 = vmatprep.subr.bf16.mxu0 0
    %1213 = vmatpush1.bf16.xpose.msra.mxu0 0
    %1214 = vmatprep.subr.bf16.mxu0 0
    %1215 = vmatpush1.bf16.xpose.msra.mxu0 0
    %1216 = vmatprep.subr.bf16.mxu0 0
    %1217 = vmatpush1.bf16.xpose.msra.mxu0 0
    %1218 = vmatprep.subr.bf16.mxu0 0
    %1219 = vmatpush1.bf16.xpose.msra.mxu0 0
    %1220 = vmatprep.subr.bf16.mxu0 0
    %1221 = vmatpush1.bf16.xpose.msra.mxu0 %v1204
    %1222 = vmatprep.subr.bf16.mxu0 0
    %1223 = vmatpush2.bf16.xpose.msra.mxu0 0
    %1224 = vmatprep.subr.bf16.mxu0 0
    %1225 = vmatpush2.bf16.xpose.msra.mxu0 0
    %1226 = vmatprep.subr.bf16.mxu0 0
    %1227 = vmatpush2.bf16.xpose.msra.mxu0 0
    %1228 = vmatprep.subr.bf16.mxu0 0
    %1229 = vmatpush2.bf16.xpose.msra.mxu0 0
    %1230 = vmatprep.subr.bf16.mxu0 0
    %1231 = vmatpush2.bf16.xpose.msra.mxu0 0
    %1232 = vmatprep.subr.bf16.mxu0 0
    %1233 = vmatpush2.bf16.xpose.msra.mxu0 0
    %1234 = vmatprep.subr.bf16.mxu0 0
    %1235 = vmatpush2.bf16.xpose.msra.mxu0 0
    %1236 = vmatprep.subr.bf16.mxu0 0
    %1237 = vmatpush2.bf16.xpose.msra.mxu0 0
    %1238 = vmatprep.mubr.bf16.mxu0 0
    %1239 = vmatmul.mubr.bf16.gmra.mxu0 %v1201
    %v1240 = vpop.f32.mrf.mxu0
    %v1241 = vadd.f32 %v306, %v1240
    %v1242 = vpop.f32.mrf.mxu0
    %v1243 = vpop.f32.mrf.mxu0
    %v1244 = vpop.f32.mrf.mxu0
    %1245 = vdwg.mxu0
    %1246 = vrot.lane.b32.xlu0 %v308, 112
    %v1247 = vpop.permute.xlu0 %1246
    %1248 = vrot.lane.b32.xlu0 %v308, 80
    %v1249 = vpop.permute.xlu0 %1248
    %v1251 = vsel %vm318, %v1247, 0
    %v1254 = vsel %vm318, %v1249, 0
    %1256 = vmatprep.subr.bf16.mxu0 0
    %1257 = vmatpush1.bf16.xpose.msra.mxu0 0
    %1258 = vmatprep.subr.bf16.mxu0 0
    %1259 = vmatpush1.bf16.xpose.msra.mxu0 0
    %1260 = vmatprep.subr.bf16.mxu0 0
    %1261 = vmatpush1.bf16.xpose.msra.mxu0 0
    %1262 = vmatprep.subr.bf16.mxu0 0
    %1263 = vmatpush1.bf16.xpose.msra.mxu0 0
    %1264 = vmatprep.subr.bf16.mxu0 0
    %1265 = vmatpush1.bf16.xpose.msra.mxu0 0
    %1266 = vmatprep.subr.bf16.mxu0 0
    %1267 = vmatpush1.bf16.xpose.msra.mxu0 0
    %1268 = vmatprep.subr.bf16.mxu0 0
    %1269 = vmatpush1.bf16.xpose.msra.mxu0 0
    %1270 = vmatprep.subr.bf16.mxu0 0
    %1271 = vmatpush1.bf16.xpose.msra.mxu0 %v1254
    %1272 = vmatprep.subr.bf16.mxu0 0
    %1273 = vmatpush2.bf16.xpose.msra.mxu0 0
    %1274 = vmatprep.subr.bf16.mxu0 0
    %1275 = vmatpush2.bf16.xpose.msra.mxu0 0
    %1276 = vmatprep.subr.bf16.mxu0 0
    %1277 = vmatpush2.bf16.xpose.msra.mxu0 0
    %1278 = vmatprep.subr.bf16.mxu0 0
    %1279 = vmatpush2.bf16.xpose.msra.mxu0 0
    %1280 = vmatprep.subr.bf16.mxu0 0
    %1281 = vmatpush2.bf16.xpose.msra.mxu0 0
    %1282 = vmatprep.subr.bf16.mxu0 0
    %1283 = vmatpush2.bf16.xpose.msra.mxu0 0
    %1284 = vmatprep.subr.bf16.mxu0 0
    %1285 = vmatpush2.bf16.xpose.msra.mxu0 0
    %1286 = vmatprep.subr.bf16.mxu0 0
    %1287 = vmatpush2.bf16.xpose.msra.mxu0 0
    %1288 = vmatprep.mubr.bf16.mxu0 0
    %1289 = vmatmul.mubr.bf16.gmra.mxu0 %v1251
    %v1290 = vpop.f32.mrf.mxu0
    %v1291 = vadd.f32 %v306, %v1290
    %v1292 = vpop.f32.mrf.mxu0
    %v1293 = vpop.f32.mrf.mxu0
    %v1294 = vpop.f32.mrf.mxu0
    %1295 = vdwg.mxu0
    %1296 = vrot.lane.b32.xlu0 %v309, 112
    %v1297 = vpop.permute.xlu0 %1296
    %1298 = vrot.lane.b32.xlu0 %v309, 80
    %v1299 = vpop.permute.xlu0 %1298
    %v1301 = vsel %vm318, %v1297, 0
    %v1304 = vsel %vm318, %v1299, 0
    %1306 = vmatprep.subr.bf16.mxu0 0
    %1307 = vmatpush1.bf16.xpose.msra.mxu0 0
    %1308 = vmatprep.subr.bf16.mxu0 0
    %1309 = vmatpush1.bf16.xpose.msra.mxu0 0
    %1310 = vmatprep.subr.bf16.mxu0 0
    %1311 = vmatpush1.bf16.xpose.msra.mxu0 0
    %1312 = vmatprep.subr.bf16.mxu0 0
    %1313 = vmatpush1.bf16.xpose.msra.mxu0 0
    %1314 = vmatprep.subr.bf16.mxu0 0
    %1315 = vmatpush1.bf16.xpose.msra.mxu0 0
    %1316 = vmatprep.subr.bf16.mxu0 0
    %1317 = vmatpush1.bf16.xpose.msra.mxu0 0
    %1318 = vmatprep.subr.bf16.mxu0 0
    %1319 = vmatpush1.bf16.xpose.msra.mxu0 0
    %1320 = vmatprep.subr.bf16.mxu0 0
    %1321 = vmatpush1.bf16.xpose.msra.mxu0 %v1304
    %1322 = vmatprep.subr.bf16.mxu0 0
    %1323 = vmatpush2.bf16.xpose.msra.mxu0 0
    %1324 = vmatprep.subr.bf16.mxu0 0
    %1325 = vmatpush2.bf16.xpose.msra.mxu0 0
    %1326 = vmatprep.subr.bf16.mxu0 0
    %1327 = vmatpush2.bf16.xpose.msra.mxu0 0
    %1328 = vmatprep.subr.bf16.mxu0 0
    %1329 = vmatpush2.bf16.xpose.msra.mxu0 0
    %1330 = vmatprep.subr.bf16.mxu0 0
    %1331 = vmatpush2.bf16.xpose.msra.mxu0 0
    %1332 = vmatprep.subr.bf16.mxu0 0
    %1333 = vmatpush2.bf16.xpose.msra.mxu0 0
    %1334 = vmatprep.subr.bf16.mxu0 0
    %1335 = vmatpush2.bf16.xpose.msra.mxu0 0
    %1336 = vmatprep.subr.bf16.mxu0 0
    %1337 = vmatpush2.bf16.xpose.msra.mxu0 0
    %1338 = vmatprep.mubr.bf16.mxu0 0
    %1339 = vmatmul.mubr.bf16.gmra.mxu0 %v1301
    %v1340 = vpop.f32.mrf.mxu0
    %v1341 = vadd.f32 %v306, %v1340
    %v1342 = vpop.f32.mrf.mxu0
    %v1343 = vpop.f32.mrf.mxu0
    %v1344 = vpop.f32.mrf.mxu0
    %1345 = vdwg.mxu0
    %1346 = vrot.lane.b32.xlu0 %v310, 112
    %v1347 = vpop.permute.xlu0 %1346
    %1348 = vrot.lane.b32.xlu0 %v310, 80
    %v1349 = vpop.permute.xlu0 %1348
    %v1351 = vsel %vm318, %v1347, 0
    %v1354 = vsel %vm318, %v1349, 0
    %1356 = vmatprep.subr.bf16.mxu0 0
    %1357 = vmatpush1.bf16.xpose.msra.mxu0 0
    %1358 = vmatprep.subr.bf16.mxu0 0
    %1359 = vmatpush1.bf16.xpose.msra.mxu0 0
    %1360 = vmatprep.subr.bf16.mxu0 0
    %1361 = vmatpush1.bf16.xpose.msra.mxu0 0
    %1362 = vmatprep.subr.bf16.mxu0 0
    %1363 = vmatpush1.bf16.xpose.msra.mxu0 0
    %1364 = vmatprep.subr.bf16.mxu0 0
    %1365 = vmatpush1.bf16.xpose.msra.mxu0 0
    %1366 = vmatprep.subr.bf16.mxu0 0
    %1367 = vmatpush1.bf16.xpose.msra.mxu0 0
    %1368 = vmatprep.subr.bf16.mxu0 0
    %1369 = vmatpush1.bf16.xpose.msra.mxu0 0
    %1370 = vmatprep.subr.bf16.mxu0 0
    %1371 = vmatpush1.bf16.xpose.msra.mxu0 %v1354
    %1372 = vmatprep.subr.bf16.mxu0 0
    %1373 = vmatpush2.bf16.xpose.msra.mxu0 0
    %1374 = vmatprep.subr.bf16.mxu0 0
    %1375 = vmatpush2.bf16.xpose.msra.mxu0 0
    %1376 = vmatprep.subr.bf16.mxu0 0
    %1377 = vmatpush2.bf16.xpose.msra.mxu0 0
    %1378 = vmatprep.subr.bf16.mxu0 0
    %1379 = vmatpush2.bf16.xpose.msra.mxu0 0
    %1380 = vmatprep.subr.bf16.mxu0 0
    %1381 = vmatpush2.bf16.xpose.msra.mxu0 0
    %1382 = vmatprep.subr.bf16.mxu0 0
    %1383 = vmatpush2.bf16.xpose.msra.mxu0 0
    %1384 = vmatprep.subr.bf16.mxu0 0
    %1385 = vmatpush2.bf16.xpose.msra.mxu0 0
    %1386 = vmatprep.subr.bf16.mxu0 0
    %1387 = vmatpush2.bf16.xpose.msra.mxu0 0
    %1388 = vmatprep.mubr.bf16.mxu0 0
    %1389 = vmatmul.mubr.bf16.gmra.mxu0 %v1351
    %v1390 = vpop.f32.mrf.mxu0
    %v1391 = vadd.f32 %v306, %v1390
    %v1392 = vpop.f32.mrf.mxu0
    %v1393 = vpop.f32.mrf.mxu0
    %v1394 = vpop.f32.mrf.mxu0
    %1395 = vdwg.mxu0
    %1396 = vrot.lane.b32.xlu0 %v311, 112
    %v1397 = vpop.permute.xlu0 %1396
    %1398 = vrot.lane.b32.xlu0 %v311, 80
    %v1399 = vpop.permute.xlu0 %1398
    %v1401 = vsel %vm318, %v1397, 0
    %v1404 = vsel %vm318, %v1399, 0
    %1406 = vmatprep.subr.bf16.mxu0 0
    %1407 = vmatpush1.bf16.xpose.msra.mxu0 0
    %1408 = vmatprep.subr.bf16.mxu0 0
    %1409 = vmatpush1.bf16.xpose.msra.mxu0 0
    %1410 = vmatprep.subr.bf16.mxu0 0
    %1411 = vmatpush1.bf16.xpose.msra.mxu0 0
    %1412 = vmatprep.subr.bf16.mxu0 0
    %1413 = vmatpush1.bf16.xpose.msra.mxu0 0
    %1414 = vmatprep.subr.bf16.mxu0 0
    %1415 = vmatpush1.bf16.xpose.msra.mxu0 0
    %1416 = vmatprep.subr.bf16.mxu0 0
    %1417 = vmatpush1.bf16.xpose.msra.mxu0 0
    %1418 = vmatprep.subr.bf16.mxu0 0
    %1419 = vmatpush1.bf16.xpose.msra.mxu0 0
    %1420 = vmatprep.subr.bf16.mxu0 0
    %1421 = vmatpush1.bf16.xpose.msra.mxu0 %v1404
    %1422 = vmatprep.subr.bf16.mxu0 0
    %1423 = vmatpush2.bf16.xpose.msra.mxu0 0
    %1424 = vmatprep.subr.bf16.mxu0 0
    %1425 = vmatpush2.bf16.xpose.msra.mxu0 0
    %1426 = vmatprep.subr.bf16.mxu0 0
    %1427 = vmatpush2.bf16.xpose.msra.mxu0 0
    %1428 = vmatprep.subr.bf16.mxu0 0
    %1429 = vmatpush2.bf16.xpose.msra.mxu0 0
    %1430 = vmatprep.subr.bf16.mxu0 0
    %1431 = vmatpush2.bf16.xpose.msra.mxu0 0
    %1432 = vmatprep.subr.bf16.mxu0 0
    %1433 = vmatpush2.bf16.xpose.msra.mxu0 0
    %1434 = vmatprep.subr.bf16.mxu0 0
    %1435 = vmatpush2.bf16.xpose.msra.mxu0 0
    %1436 = vmatprep.subr.bf16.mxu0 0
    %1437 = vmatpush2.bf16.xpose.msra.mxu0 0
    %1438 = vmatprep.mubr.bf16.mxu0 0
    %1439 = vmatmul.mubr.bf16.gmra.mxu0 %v1401
    %v1440 = vpop.f32.mrf.mxu0
    %v1441 = vadd.f32 %v306, %v1440
    %v1442 = vpop.f32.mrf.mxu0
    %v1443 = vpop.f32.mrf.mxu0
    %v1444 = vpop.f32.mrf.mxu0
    %1445 = vdwg.mxu0
    %1446 = vrot.lane.b32.xlu0 %v312, 112
    %v1447 = vpop.permute.xlu0 %1446
    %1448 = vrot.lane.b32.xlu0 %v312, 80
    %v1449 = vpop.permute.xlu0 %1448
    %v1451 = vsel %vm318, %v1447, 0
    %v1454 = vsel %vm318, %v1449, 0
    %1456 = vmatprep.subr.bf16.mxu0 0
    %1457 = vmatpush1.bf16.xpose.msra.mxu0 0
    %1458 = vmatprep.subr.bf16.mxu0 0
    %1459 = vmatpush1.bf16.xpose.msra.mxu0 0
    %1460 = vmatprep.subr.bf16.mxu0 0
    %1461 = vmatpush1.bf16.xpose.msra.mxu0 0
    %1462 = vmatprep.subr.bf16.mxu0 0
    %1463 = vmatpush1.bf16.xpose.msra.mxu0 0
    %1464 = vmatprep.subr.bf16.mxu0 0
    %1465 = vmatpush1.bf16.xpose.msra.mxu0 0
    %1466 = vmatprep.subr.bf16.mxu0 0
    %1467 = vmatpush1.bf16.xpose.msra.mxu0 0
    %1468 = vmatprep.subr.bf16.mxu0 0
    %1469 = vmatpush1.bf16.xpose.msra.mxu0 0
    %1470 = vmatprep.subr.bf16.mxu0 0
    %1471 = vmatpush1.bf16.xpose.msra.mxu0 %v1454
    %1472 = vmatprep.subr.bf16.mxu0 0
    %1473 = vmatpush2.bf16.xpose.msra.mxu0 0
    %1474 = vmatprep.subr.bf16.mxu0 0
    %1475 = vmatpush2.bf16.xpose.msra.mxu0 0
    %1476 = vmatprep.subr.bf16.mxu0 0
    %1477 = vmatpush2.bf16.xpose.msra.mxu0 0
    %1478 = vmatprep.subr.bf16.mxu0 0
    %1479 = vmatpush2.bf16.xpose.msra.mxu0 0
    %1480 = vmatprep.subr.bf16.mxu0 0
    %1481 = vmatpush2.bf16.xpose.msra.mxu0 0
    %1482 = vmatprep.subr.bf16.mxu0 0
    %1483 = vmatpush2.bf16.xpose.msra.mxu0 0
    %1484 = vmatprep.subr.bf16.mxu0 0
    %1485 = vmatpush2.bf16.xpose.msra.mxu0 0
    %1486 = vmatprep.subr.bf16.mxu0 0
    %1487 = vmatpush2.bf16.xpose.msra.mxu0 0
    %1488 = vmatprep.mubr.bf16.mxu0 0
    %1489 = vmatmul.mubr.bf16.gmra.mxu0 %v1451
    %v1490 = vpop.f32.mrf.mxu0
    %v1491 = vadd.f32 %v306, %v1490
    %v1492 = vpop.f32.mrf.mxu0
    %v1493 = vpop.f32.mrf.mxu0
    %v1494 = vpop.f32.mrf.mxu0
    %1495 = vdwg.mxu0
    %1496 = vrot.lane.b32.xlu0 %v313, 112
    %v1497 = vpop.permute.xlu0 %1496
    %1498 = vrot.lane.b32.xlu0 %v313, 80
    %v1499 = vpop.permute.xlu0 %1498
    %v1501 = vsel %vm318, %v1497, 0
    %v1504 = vsel %vm318, %v1499, 0
    %1506 = vmatprep.subr.bf16.mxu0 0
    %1507 = vmatpush1.bf16.xpose.msra.mxu0 0
    %1508 = vmatprep.subr.bf16.mxu0 0
    %1509 = vmatpush1.bf16.xpose.msra.mxu0 0
    %1510 = vmatprep.subr.bf16.mxu0 0
    %1511 = vmatpush1.bf16.xpose.msra.mxu0 0
    %1512 = vmatprep.subr.bf16.mxu0 0
    %1513 = vmatpush1.bf16.xpose.msra.mxu0 0
    %1514 = vmatprep.subr.bf16.mxu0 0
    %1515 = vmatpush1.bf16.xpose.msra.mxu0 0
    %1516 = vmatprep.subr.bf16.mxu0 0
    %1517 = vmatpush1.bf16.xpose.msra.mxu0 0
    %1518 = vmatprep.subr.bf16.mxu0 0
    %1519 = vmatpush1.bf16.xpose.msra.mxu0 0
    %1520 = vmatprep.subr.bf16.mxu0 0
    %1521 = vmatpush1.bf16.xpose.msra.mxu0 %v1504
    %1522 = vmatprep.subr.bf16.mxu0 0
    %1523 = vmatpush2.bf16.xpose.msra.mxu0 0
    %1524 = vmatprep.subr.bf16.mxu0 0
    %1525 = vmatpush2.bf16.xpose.msra.mxu0 0
    %1526 = vmatprep.subr.bf16.mxu0 0
    %1527 = vmatpush2.bf16.xpose.msra.mxu0 0
    %1528 = vmatprep.subr.bf16.mxu0 0
    %1529 = vmatpush2.bf16.xpose.msra.mxu0 0
    %1530 = vmatprep.subr.bf16.mxu0 0
    %1531 = vmatpush2.bf16.xpose.msra.mxu0 0
    %1532 = vmatprep.subr.bf16.mxu0 0
    %1533 = vmatpush2.bf16.xpose.msra.mxu0 0
    %1534 = vmatprep.subr.bf16.mxu0 0
    %1535 = vmatpush2.bf16.xpose.msra.mxu0 0
    %1536 = vmatprep.subr.bf16.mxu0 0
    %1537 = vmatpush2.bf16.xpose.msra.mxu0 0
    %1538 = vmatprep.mubr.bf16.mxu0 0
    %1539 = vmatmul.mubr.bf16.gmra.mxu0 %v1501
    %v1540 = vpop.f32.mrf.mxu0
    %v1541 = vadd.f32 %v306, %v1540
    %v1542 = vpop.f32.mrf.mxu0
    %v1543 = vpop.f32.mrf.mxu0
    %v1544 = vpop.f32.mrf.mxu0
    %1545 = vdwg.mxu0
    %1546 = vrot.lane.b32.xlu0 %v314, 112
    %v1547 = vpop.permute.xlu0 %1546
    %1548 = vrot.lane.b32.xlu0 %v314, 80
    %v1549 = vpop.permute.xlu0 %1548
    %v1551 = vsel %vm318, %v1547, 0
    %v1554 = vsel %vm318, %v1549, 0
    %1556 = vmatprep.subr.bf16.mxu0 0
    %1557 = vmatpush1.bf16.xpose.msra.mxu0 0
    %1558 = vmatprep.subr.bf16.mxu0 0
    %1559 = vmatpush1.bf16.xpose.msra.mxu0 0
    %1560 = vmatprep.subr.bf16.mxu0 0
    %1561 = vmatpush1.bf16.xpose.msra.mxu0 0
    %1562 = vmatprep.subr.bf16.mxu0 0
    %1563 = vmatpush1.bf16.xpose.msra.mxu0 0
    %1564 = vmatprep.subr.bf16.mxu0 0
    %1565 = vmatpush1.bf16.xpose.msra.mxu0 0
    %1566 = vmatprep.subr.bf16.mxu0 0
    %1567 = vmatpush1.bf16.xpose.msra.mxu0 0
    %1568 = vmatprep.subr.bf16.mxu0 0
    %1569 = vmatpush1.bf16.xpose.msra.mxu0 0
    %1570 = vmatprep.subr.bf16.mxu0 0
    %1571 = vmatpush1.bf16.xpose.msra.mxu0 %v1554
    %1572 = vmatprep.subr.bf16.mxu0 0
    %1573 = vmatpush2.bf16.xpose.msra.mxu0 0
    %1574 = vmatprep.subr.bf16.mxu0 0
    %1575 = vmatpush2.bf16.xpose.msra.mxu0 0
    %1576 = vmatprep.subr.bf16.mxu0 0
    %1577 = vmatpush2.bf16.xpose.msra.mxu0 0
    %1578 = vmatprep.subr.bf16.mxu0 0
    %1579 = vmatpush2.bf16.xpose.msra.mxu0 0
    %1580 = vmatprep.subr.bf16.mxu0 0
    %1581 = vmatpush2.bf16.xpose.msra.mxu0 0
    %1582 = vmatprep.subr.bf16.mxu0 0
    %1583 = vmatpush2.bf16.xpose.msra.mxu0 0
    %1584 = vmatprep.subr.bf16.mxu0 0
    %1585 = vmatpush2.bf16.xpose.msra.mxu0 0
    %1586 = vmatprep.subr.bf16.mxu0 0
    %1587 = vmatpush2.bf16.xpose.msra.mxu0 0
    %1588 = vmatprep.mubr.bf16.mxu0 0
    %1589 = vmatmul.mubr.bf16.gmra.mxu0 %v1551
    %v1590 = vpop.f32.mrf.mxu0
    %v1591 = vadd.f32 %v306, %v1590
    %v1592 = vpop.f32.mrf.mxu0
    %v1593 = vpop.f32.mrf.mxu0
    %v1594 = vpop.f32.mrf.mxu0
    %1595 = vdwg.mxu0
    %v1596 = vsel %vm708, %v1241, -inf
    %1597 = vmax.xlane.f32.xlu0 %v1596
    %v1598 = vpop.xlane.xlu0 %1597
    %v1599 = vsel %vm708, %v1291, -inf
    %1600 = vmax.xlane.f32.xlu0 %v1599
    %v1601 = vpop.xlane.xlu0 %1600
    %v1602 = vsel %vm708, %v1341, -inf
    %1603 = vmax.xlane.f32.xlu0 %v1602
    %v1604 = vpop.xlane.xlu0 %1603
    %v1605 = vsel %vm708, %v1391, -inf
    %1606 = vmax.xlane.f32.xlu0 %v1605
    %v1607 = vpop.xlane.xlu0 %1606
    %v1608 = vsel %vm708, %v1441, -inf
    %1609 = vmax.xlane.f32.xlu0 %v1608
    %v1610 = vpop.xlane.xlu0 %1609
    %v1611 = vsel %vm708, %v1491, -inf
    %1612 = vmax.xlane.f32.xlu0 %v1611
    %v1613 = vpop.xlane.xlu0 %1612
    %v1614 = vsel %vm708, %v1541, -inf
    %1615 = vmax.xlane.f32.xlu0 %v1614
    %v1616 = vpop.xlane.xlu0 %1615
    %v1617 = vsel %vm708, %v1591, -inf
    %1618 = vmax.xlane.f32.xlu0 %v1617
    %v1619 = vpop.xlane.xlu0 %1618
    %v1620 = vsub.f32 %v1241, %v1598
    %v1621 = vsub.f32 %v1291, %v1601
    %v1622 = vsub.f32 %v1341, %v1604
    %v1623 = vsub.f32 %v1391, %v1607
    %v1624 = vsub.f32 %v1441, %v1610
    %v1625 = vsub.f32 %v1491, %v1613
    %v1626 = vsub.f32 %v1541, %v1616
    %v1627 = vsub.f32 %v1591, %v1619
    %v1628 = vmul.f32 %v1620, 1.442695
    %v1629 = vpow.pop %v1628
    %v1630 = vmul.f32 %v1621, 1.442695
    %v1631 = vpow.pop %v1630
    %v1632 = vmul.f32 %v1622, 1.442695
    %v1633 = vpow.pop %v1632
    %v1634 = vmul.f32 %v1623, 1.442695
    %v1635 = vpow.pop %v1634
    %v1636 = vmul.f32 %v1624, 1.442695
    %v1637 = vpow.pop %v1636
    %v1638 = vmul.f32 %v1625, 1.442695
    %v1639 = vpow.pop %v1638
    %v1640 = vmul.f32 %v1626, 1.442695
    %v1641 = vpow.pop %v1640
    %v1642 = vmul.f32 %v1627, 1.442695
    %v1643 = vpow.pop %v1642
    %v1644 = vsel %vm708, %v1629, 0.0
    %1645 = vadd.xlane.f32.xlu0 %v1644
    %v1646 = vpop.xlane.xlu0 %1645
    %v1647 = vsel %vm708, %v1631, 0.0
    %1648 = vadd.xlane.f32.xlu0 %v1647
    %v1649 = vpop.xlane.xlu0 %1648
    %v1650 = vsel %vm708, %v1633, 0.0
    %1651 = vadd.xlane.f32.xlu0 %v1650
    %v1652 = vpop.xlane.xlu0 %1651
    %v1653 = vsel %vm708, %v1635, 0.0
    %1654 = vadd.xlane.f32.xlu0 %v1653
    %v1655 = vpop.xlane.xlu0 %1654
    %v1656 = vsel %vm708, %v1637, 0.0
    %1657 = vadd.xlane.f32.xlu0 %v1656
    %v1658 = vpop.xlane.xlu0 %1657
    %v1659 = vsel %vm708, %v1639, 0.0
    %1660 = vadd.xlane.f32.xlu0 %v1659
    %v1661 = vpop.xlane.xlu0 %1660
    %v1662 = vsel %vm708, %v1641, 0.0
    %1663 = vadd.xlane.f32.xlu0 %v1662
    %v1664 = vpop.xlane.xlu0 %1663
    %v1665 = vsel %vm708, %v1643, 0.0
    %1666 = vadd.xlane.f32.xlu0 %v1665
    %v1667 = vpop.xlane.xlu0 %1666
    %v1668 = vrcp.pop %v1646
    %v1669 = vrcp.pop %v1649
    %v1670 = vrcp.pop %v1652
    %v1671 = vrcp.pop %v1655
    %v1672 = vrcp.pop %v1658
    %v1673 = vrcp.pop %v1661
    %v1674 = vrcp.pop %v1664
    %v1675 = vrcp.pop %v1667
    %v1676 = vmul.f32 %v1629, %v1668
    %v1677 = vmul.f32 %v1631, %v1669
    %v1678 = vmul.f32 %v1633, %v1670
    %v1679 = vmul.f32 %v1635, %v1671
    %v1680 = vmul.f32 %v1637, %v1672
    %v1681 = vmul.f32 %v1639, %v1673
    %v1682 = vmul.f32 %v1641, %v1674
    %v1683 = vmul.f32 %v1643, %v1675
    %v1684 = vpack.c.bf16 %v1676, %v1676
    %v1685 = vpack.c.bf16 %v1677, %v1677
    %v1686 = vpack.c.bf16 %v1678, %v1678
    %v1687 = vpack.c.bf16 %v1679, %v1679
    %v1688 = vpack.c.bf16 %v1680, %v1680
    %v1689 = vpack.c.bf16 %v1681, %v1681
    %v1690 = vpack.c.bf16 %v1682, %v1682
    %v1691 = vpack.c.bf16 %v1683, %v1683
    %1692 = vrot.lane.b32.xlu0 %v307, 48
    %v1693 = vpop.permute.xlu0 %1692
    %v1695 = vsel %vm708, %v1684, 0
    %v1698 = vsel %vm810, %v1693, 0
    %1700 = vmatprep.subr.bf16.mxu0 0
    %1701 = vmatpush1.bf16.msra.mxu0 0
    %1702 = vmatprep.subr.bf16.mxu0 0
    %1703 = vmatpush1.bf16.msra.mxu0 0
    %1704 = vmatprep.subr.bf16.mxu0 0
    %1705 = vmatpush1.bf16.msra.mxu0 0
    %1706 = vmatprep.subr.bf16.mxu0 0
    %1707 = vmatpush1.bf16.msra.mxu0 0
    %1708 = vmatprep.subr.bf16.mxu0 0
    %1709 = vmatpush1.bf16.msra.mxu0 0
    %1710 = vmatprep.subr.bf16.mxu0 0
    %1711 = vmatpush1.bf16.msra.mxu0 0
    %1712 = vmatprep.subr.bf16.mxu0 0
    %1713 = vmatpush1.bf16.msra.mxu0 0
    %1714 = vmatprep.subr.bf16.mxu0 0
    %1715 = vmatpush1.bf16.msra.mxu0 %v1698
    %1716 = vmatprep.subr.bf16.mxu0 0
    %1717 = vmatpush2.bf16.msra.mxu0 0
    %1718 = vmatprep.subr.bf16.mxu0 0
    %1719 = vmatpush2.bf16.msra.mxu0 0
    %1720 = vmatprep.subr.bf16.mxu0 0
    %1721 = vmatpush2.bf16.msra.mxu0 0
    %1722 = vmatprep.subr.bf16.mxu0 0
    %1723 = vmatpush2.bf16.msra.mxu0 0
    %1724 = vmatprep.subr.bf16.mxu0 0
    %1725 = vmatpush2.bf16.msra.mxu0 0
    %1726 = vmatprep.subr.bf16.mxu0 0
    %1727 = vmatpush2.bf16.msra.mxu0 0
    %1728 = vmatprep.subr.bf16.mxu0 0
    %1729 = vmatpush2.bf16.msra.mxu0 0
    %1730 = vmatprep.subr.bf16.mxu0 0
    %1731 = vmatpush2.bf16.msra.mxu0 0
    %1732 = vmatprep.mubr.bf16.mxu0 0
    %1733 = vmatmul.mubr.bf16.gmra.mxu0 %v1695
    %v1734 = vpop.f32.mrf.mxu0
    %v1735 = vadd.f32 0.0, %v1734
    %v1736 = vpop.f32.mrf.mxu0
    %v1737 = vpop.f32.mrf.mxu0
    %v1738 = vpop.f32.mrf.mxu0
    %1739 = vdwg.mxu0
    %1740 = vrot.lane.b32.xlu0 %v308, 48
    %v1741 = vpop.permute.xlu0 %1740
    %v1743 = vsel %vm708, %v1685, 0
    %v1746 = vsel %vm810, %v1741, 0
    %1748 = vmatprep.subr.bf16.mxu0 0
    %1749 = vmatpush1.bf16.msra.mxu0 0
    %1750 = vmatprep.subr.bf16.mxu0 0
    %1751 = vmatpush1.bf16.msra.mxu0 0
    %1752 = vmatprep.subr.bf16.mxu0 0
    %1753 = vmatpush1.bf16.msra.mxu0 0
    %1754 = vmatprep.subr.bf16.mxu0 0
    %1755 = vmatpush1.bf16.msra.mxu0 0
    %1756 = vmatprep.subr.bf16.mxu0 0
    %1757 = vmatpush1.bf16.msra.mxu0 0
    %1758 = vmatprep.subr.bf16.mxu0 0
    %1759 = vmatpush1.bf16.msra.mxu0 0
    %1760 = vmatprep.subr.bf16.mxu0 0
    %1761 = vmatpush1.bf16.msra.mxu0 0
    %1762 = vmatprep.subr.bf16.mxu0 0
    %1763 = vmatpush1.bf16.msra.mxu0 %v1746
    %1764 = vmatprep.subr.bf16.mxu0 0
    %1765 = vmatpush2.bf16.msra.mxu0 0
    %1766 = vmatprep.subr.bf16.mxu0 0
    %1767 = vmatpush2.bf16.msra.mxu0 0
    %1768 = vmatprep.subr.bf16.mxu0 0
    %1769 = vmatpush2.bf16.msra.mxu0 0
    %1770 = vmatprep.subr.bf16.mxu0 0
    %1771 = vmatpush2.bf16.msra.mxu0 0
    %1772 = vmatprep.subr.bf16.mxu0 0
    %1773 = vmatpush2.bf16.msra.mxu0 0
    %1774 = vmatprep.subr.bf16.mxu0 0
    %1775 = vmatpush2.bf16.msra.mxu0 0
    %1776 = vmatprep.subr.bf16.mxu0 0
    %1777 = vmatpush2.bf16.msra.mxu0 0
    %1778 = vmatprep.subr.bf16.mxu0 0
    %1779 = vmatpush2.bf16.msra.mxu0 0
    %1780 = vmatprep.mubr.bf16.mxu0 0
    %1781 = vmatmul.mubr.bf16.gmra.mxu0 %v1743
    %v1782 = vpop.f32.mrf.mxu0
    %v1783 = vadd.f32 0.0, %v1782
    %v1784 = vpop.f32.mrf.mxu0
    %v1785 = vpop.f32.mrf.mxu0
    %v1786 = vpop.f32.mrf.mxu0
    %1787 = vdwg.mxu0
    %1788 = vrot.lane.b32.xlu0 %v309, 48
    %v1789 = vpop.permute.xlu0 %1788
    %v1791 = vsel %vm708, %v1686, 0
    %v1794 = vsel %vm810, %v1789, 0
    %1796 = vmatprep.subr.bf16.mxu0 0
    %1797 = vmatpush1.bf16.msra.mxu0 0
    %1798 = vmatprep.subr.bf16.mxu0 0
    %1799 = vmatpush1.bf16.msra.mxu0 0
    %1800 = vmatprep.subr.bf16.mxu0 0
    %1801 = vmatpush1.bf16.msra.mxu0 0
    %1802 = vmatprep.subr.bf16.mxu0 0
    %1803 = vmatpush1.bf16.msra.mxu0 0
    %1804 = vmatprep.subr.bf16.mxu0 0
    %1805 = vmatpush1.bf16.msra.mxu0 0
    %1806 = vmatprep.subr.bf16.mxu0 0
    %1807 = vmatpush1.bf16.msra.mxu0 0
    %1808 = vmatprep.subr.bf16.mxu0 0
    %1809 = vmatpush1.bf16.msra.mxu0 0
    %1810 = vmatprep.subr.bf16.mxu0 0
    %1811 = vmatpush1.bf16.msra.mxu0 %v1794
    %1812 = vmatprep.subr.bf16.mxu0 0
    %1813 = vmatpush2.bf16.msra.mxu0 0
    %1814 = vmatprep.subr.bf16.mxu0 0
    %1815 = vmatpush2.bf16.msra.mxu0 0
    %1816 = vmatprep.subr.bf16.mxu0 0
    %1817 = vmatpush2.bf16.msra.mxu0 0
    %1818 = vmatprep.subr.bf16.mxu0 0
    %1819 = vmatpush2.bf16.msra.mxu0 0
    %1820 = vmatprep.subr.bf16.mxu0 0
    %1821 = vmatpush2.bf16.msra.mxu0 0
    %1822 = vmatprep.subr.bf16.mxu0 0
    %1823 = vmatpush2.bf16.msra.mxu0 0
    %1824 = vmatprep.subr.bf16.mxu0 0
    %1825 = vmatpush2.bf16.msra.mxu0 0
    %1826 = vmatprep.subr.bf16.mxu0 0
    %1827 = vmatpush2.bf16.msra.mxu0 0
    %1828 = vmatprep.mubr.bf16.mxu0 0
    %1829 = vmatmul.mubr.bf16.gmra.mxu0 %v1791
    %v1830 = vpop.f32.mrf.mxu0
    %v1831 = vadd.f32 0.0, %v1830
    %v1832 = vpop.f32.mrf.mxu0
    %v1833 = vpop.f32.mrf.mxu0
    %v1834 = vpop.f32.mrf.mxu0
    %1835 = vdwg.mxu0
    %1836 = vrot.lane.b32.xlu0 %v310, 48
    %v1837 = vpop.permute.xlu0 %1836
    %v1839 = vsel %vm708, %v1687, 0
    %v1842 = vsel %vm810, %v1837, 0
    %1844 = vmatprep.subr.bf16.mxu0 0
    %1845 = vmatpush1.bf16.msra.mxu0 0
    %1846 = vmatprep.subr.bf16.mxu0 0
    %1847 = vmatpush1.bf16.msra.mxu0 0
    %1848 = vmatprep.subr.bf16.mxu0 0
    %1849 = vmatpush1.bf16.msra.mxu0 0
    %1850 = vmatprep.subr.bf16.mxu0 0
    %1851 = vmatpush1.bf16.msra.mxu0 0
    %1852 = vmatprep.subr.bf16.mxu0 0
    %1853 = vmatpush1.bf16.msra.mxu0 0
    %1854 = vmatprep.subr.bf16.mxu0 0
    %1855 = vmatpush1.bf16.msra.mxu0 0
    %1856 = vmatprep.subr.bf16.mxu0 0
    %1857 = vmatpush1.bf16.msra.mxu0 0
    %1858 = vmatprep.subr.bf16.mxu0 0
    %1859 = vmatpush1.bf16.msra.mxu0 %v1842
    %1860 = vmatprep.subr.bf16.mxu0 0
    %1861 = vmatpush2.bf16.msra.mxu0 0
    %1862 = vmatprep.subr.bf16.mxu0 0
    %1863 = vmatpush2.bf16.msra.mxu0 0
    %1864 = vmatprep.subr.bf16.mxu0 0
    %1865 = vmatpush2.bf16.msra.mxu0 0
    %1866 = vmatprep.subr.bf16.mxu0 0
    %1867 = vmatpush2.bf16.msra.mxu0 0
    %1868 = vmatprep.subr.bf16.mxu0 0
    %1869 = vmatpush2.bf16.msra.mxu0 0
    %1870 = vmatprep.subr.bf16.mxu0 0
    %1871 = vmatpush2.bf16.msra.mxu0 0
    %1872 = vmatprep.subr.bf16.mxu0 0
    %1873 = vmatpush2.bf16.msra.mxu0 0
    %1874 = vmatprep.subr.bf16.mxu0 0
    %1875 = vmatpush2.bf16.msra.mxu0 0
    %1876 = vmatprep.mubr.bf16.mxu0 0
    %1877 = vmatmul.mubr.bf16.gmra.mxu0 %v1839
    %v1878 = vpop.f32.mrf.mxu0
    %v1879 = vadd.f32 0.0, %v1878
    %v1880 = vpop.f32.mrf.mxu0
    %v1881 = vpop.f32.mrf.mxu0
    %v1882 = vpop.f32.mrf.mxu0
    %1883 = vdwg.mxu0
    %1884 = vrot.lane.b32.xlu0 %v311, 48
    %v1885 = vpop.permute.xlu0 %1884
    %v1887 = vsel %vm708, %v1688, 0
    %v1890 = vsel %vm810, %v1885, 0
    %1892 = vmatprep.subr.bf16.mxu0 0
    %1893 = vmatpush1.bf16.msra.mxu0 0
    %1894 = vmatprep.subr.bf16.mxu0 0
    %1895 = vmatpush1.bf16.msra.mxu0 0
    %1896 = vmatprep.subr.bf16.mxu0 0
    %1897 = vmatpush1.bf16.msra.mxu0 0
    %1898 = vmatprep.subr.bf16.mxu0 0
    %1899 = vmatpush1.bf16.msra.mxu0 0
    %1900 = vmatprep.subr.bf16.mxu0 0
    %1901 = vmatpush1.bf16.msra.mxu0 0
    %1902 = vmatprep.subr.bf16.mxu0 0
    %1903 = vmatpush1.bf16.msra.mxu0 0
    %1904 = vmatprep.subr.bf16.mxu0 0
    %1905 = vmatpush1.bf16.msra.mxu0 0
    %1906 = vmatprep.subr.bf16.mxu0 0
    %1907 = vmatpush1.bf16.msra.mxu0 %v1890
    %1908 = vmatprep.subr.bf16.mxu0 0
    %1909 = vmatpush2.bf16.msra.mxu0 0
    %1910 = vmatprep.subr.bf16.mxu0 0
    %1911 = vmatpush2.bf16.msra.mxu0 0
    %1912 = vmatprep.subr.bf16.mxu0 0
    %1913 = vmatpush2.bf16.msra.mxu0 0
    %1914 = vmatprep.subr.bf16.mxu0 0
    %1915 = vmatpush2.bf16.msra.mxu0 0
    %1916 = vmatprep.subr.bf16.mxu0 0
    %1917 = vmatpush2.bf16.msra.mxu0 0
    %1918 = vmatprep.subr.bf16.mxu0 0
    %1919 = vmatpush2.bf16.msra.mxu0 0
    %1920 = vmatprep.subr.bf16.mxu0 0
    %1921 = vmatpush2.bf16.msra.mxu0 0
    %1922 = vmatprep.subr.bf16.mxu0 0
    %1923 = vmatpush2.bf16.msra.mxu0 0
    %1924 = vmatprep.mubr.bf16.mxu0 0
    %1925 = vmatmul.mubr.bf16.gmra.mxu0 %v1887
    %v1926 = vpop.f32.mrf.mxu0
    %v1927 = vadd.f32 0.0, %v1926
    %v1928 = vpop.f32.mrf.mxu0
    %v1929 = vpop.f32.mrf.mxu0
    %v1930 = vpop.f32.mrf.mxu0
    %1931 = vdwg.mxu0
    %1932 = vrot.lane.b32.xlu0 %v312, 48
    %v1933 = vpop.permute.xlu0 %1932
    %v1935 = vsel %vm708, %v1689, 0
    %v1938 = vsel %vm810, %v1933, 0
    %1940 = vmatprep.subr.bf16.mxu0 0
    %1941 = vmatpush1.bf16.msra.mxu0 0
    %1942 = vmatprep.subr.bf16.mxu0 0
    %1943 = vmatpush1.bf16.msra.mxu0 0
    %1944 = vmatprep.subr.bf16.mxu0 0
    %1945 = vmatpush1.bf16.msra.mxu0 0
    %1946 = vmatprep.subr.bf16.mxu0 0
    %1947 = vmatpush1.bf16.msra.mxu0 0
    %1948 = vmatprep.subr.bf16.mxu0 0
    %1949 = vmatpush1.bf16.msra.mxu0 0
    %1950 = vmatprep.subr.bf16.mxu0 0
    %1951 = vmatpush1.bf16.msra.mxu0 0
    %1952 = vmatprep.subr.bf16.mxu0 0
    %1953 = vmatpush1.bf16.msra.mxu0 0
    %1954 = vmatprep.subr.bf16.mxu0 0
    %1955 = vmatpush1.bf16.msra.mxu0 %v1938
    %1956 = vmatprep.subr.bf16.mxu0 0
    %1957 = vmatpush2.bf16.msra.mxu0 0
    %1958 = vmatprep.subr.bf16.mxu0 0
    %1959 = vmatpush2.bf16.msra.mxu0 0
    %1960 = vmatprep.subr.bf16.mxu0 0
    %1961 = vmatpush2.bf16.msra.mxu0 0
    %1962 = vmatprep.subr.bf16.mxu0 0
    %1963 = vmatpush2.bf16.msra.mxu0 0
    %1964 = vmatprep.subr.bf16.mxu0 0
    %1965 = vmatpush2.bf16.msra.mxu0 0
    %1966 = vmatprep.subr.bf16.mxu0 0
    %1967 = vmatpush2.bf16.msra.mxu0 0
    %1968 = vmatprep.subr.bf16.mxu0 0
    %1969 = vmatpush2.bf16.msra.mxu0 0
    %1970 = vmatprep.subr.bf16.mxu0 0
    %1971 = vmatpush2.bf16.msra.mxu0 0
    %1972 = vmatprep.mubr.bf16.mxu0 0
    %1973 = vmatmul.mubr.bf16.gmra.mxu0 %v1935
    %v1974 = vpop.f32.mrf.mxu0
    %v1975 = vadd.f32 0.0, %v1974
    %v1976 = vpop.f32.mrf.mxu0
    %v1977 = vpop.f32.mrf.mxu0
    %v1978 = vpop.f32.mrf.mxu0
    %1979 = vdwg.mxu0
    %1980 = vrot.lane.b32.xlu0 %v313, 48
    %v1981 = vpop.permute.xlu0 %1980
    %v1983 = vsel %vm708, %v1690, 0
    %v1986 = vsel %vm810, %v1981, 0
    %1988 = vmatprep.subr.bf16.mxu0 0
    %1989 = vmatpush1.bf16.msra.mxu0 0
    %1990 = vmatprep.subr.bf16.mxu0 0
    %1991 = vmatpush1.bf16.msra.mxu0 0
    %1992 = vmatprep.subr.bf16.mxu0 0
    %1993 = vmatpush1.bf16.msra.mxu0 0
    %1994 = vmatprep.subr.bf16.mxu0 0
    %1995 = vmatpush1.bf16.msra.mxu0 0
    %1996 = vmatprep.subr.bf16.mxu0 0
    %1997 = vmatpush1.bf16.msra.mxu0 0
    %1998 = vmatprep.subr.bf16.mxu0 0
    %1999 = vmatpush1.bf16.msra.mxu0 0
    %2000 = vmatprep.subr.bf16.mxu0 0
    %2001 = vmatpush1.bf16.msra.mxu0 0
    %2002 = vmatprep.subr.bf16.mxu0 0
    %2003 = vmatpush1.bf16.msra.mxu0 %v1986
    %2004 = vmatprep.subr.bf16.mxu0 0
    %2005 = vmatpush2.bf16.msra.mxu0 0
    %2006 = vmatprep.subr.bf16.mxu0 0
    %2007 = vmatpush2.bf16.msra.mxu0 0
    %2008 = vmatprep.subr.bf16.mxu0 0
    %2009 = vmatpush2.bf16.msra.mxu0 0
    %2010 = vmatprep.subr.bf16.mxu0 0
    %2011 = vmatpush2.bf16.msra.mxu0 0
    %2012 = vmatprep.subr.bf16.mxu0 0
    %2013 = vmatpush2.bf16.msra.mxu0 0
    %2014 = vmatprep.subr.bf16.mxu0 0
    %2015 = vmatpush2.bf16.msra.mxu0 0
    %2016 = vmatprep.subr.bf16.mxu0 0
    %2017 = vmatpush2.bf16.msra.mxu0 0
    %2018 = vmatprep.subr.bf16.mxu0 0
    %2019 = vmatpush2.bf16.msra.mxu0 0
    %2020 = vmatprep.mubr.bf16.mxu0 0
    %2021 = vmatmul.mubr.bf16.gmra.mxu0 %v1983
    %v2022 = vpop.f32.mrf.mxu0
    %v2023 = vadd.f32 0.0, %v2022
    %v2024 = vpop.f32.mrf.mxu0
    %v2025 = vpop.f32.mrf.mxu0
    %v2026 = vpop.f32.mrf.mxu0
    %2027 = vdwg.mxu0
    %2028 = vrot.lane.b32.xlu0 %v314, 48
    %v2029 = vpop.permute.xlu0 %2028
    %v2031 = vsel %vm708, %v1691, 0
    %v2034 = vsel %vm810, %v2029, 0
    %2036 = vmatprep.subr.bf16.mxu0 0
    %2037 = vmatpush1.bf16.msra.mxu0 0
    %2038 = vmatprep.subr.bf16.mxu0 0
    %2039 = vmatpush1.bf16.msra.mxu0 0
    %2040 = vmatprep.subr.bf16.mxu0 0
    %2041 = vmatpush1.bf16.msra.mxu0 0
    %2042 = vmatprep.subr.bf16.mxu0 0
    %2043 = vmatpush1.bf16.msra.mxu0 0
    %2044 = vmatprep.subr.bf16.mxu0 0
    %2045 = vmatpush1.bf16.msra.mxu0 0
    %2046 = vmatprep.subr.bf16.mxu0 0
    %2047 = vmatpush1.bf16.msra.mxu0 0
    %2048 = vmatprep.subr.bf16.mxu0 0
    %2049 = vmatpush1.bf16.msra.mxu0 0
    %2050 = vmatprep.subr.bf16.mxu0 0
    %2051 = vmatpush1.bf16.msra.mxu0 %v2034
    %2052 = vmatprep.subr.bf16.mxu0 0
    %2053 = vmatpush2.bf16.msra.mxu0 0
    %2054 = vmatprep.subr.bf16.mxu0 0
    %2055 = vmatpush2.bf16.msra.mxu0 0
    %2056 = vmatprep.subr.bf16.mxu0 0
    %2057 = vmatpush2.bf16.msra.mxu0 0
    %2058 = vmatprep.subr.bf16.mxu0 0
    %2059 = vmatpush2.bf16.msra.mxu0 0
    %2060 = vmatprep.subr.bf16.mxu0 0
    %2061 = vmatpush2.bf16.msra.mxu0 0
    %2062 = vmatprep.subr.bf16.mxu0 0
    %2063 = vmatpush2.bf16.msra.mxu0 0
    %2064 = vmatprep.subr.bf16.mxu0 0
    %2065 = vmatpush2.bf16.msra.mxu0 0
    %2066 = vmatprep.subr.bf16.mxu0 0
    %2067 = vmatpush2.bf16.msra.mxu0 0
    %2068 = vmatprep.mubr.bf16.mxu0 0
    %2069 = vmatmul.mubr.bf16.gmra.mxu0 %v2031
    %v2070 = vpop.f32.mrf.mxu0
    %v2071 = vadd.f32 0.0, %v2070
    %v2072 = vpop.f32.mrf.mxu0
    %v2073 = vpop.f32.mrf.mxu0
    %v2074 = vpop.f32.mrf.mxu0
    %2075 = vdwg.mxu0
    %v2076 = vpack.c.bf16 %v1783, %v1735
    %v2077 = vpack.c.bf16 %v1879, %v1831
    %v2078 = vpack.c.bf16 %v1975, %v1927
    %v2079 = vpack.c.bf16 %v2071, %v2023
    %s2080 = scalar_lea.vmem [#allocation2], 8
    %v2081 = vld [vmem:[%s2080] sm:$0xf]
    %v2082 = vld [vmem:[%s2080 + $0x4] sm:$0xf]
    %v2085 = vunpack.c.l.b16 %v2081
    %v2086 = vunpack.c.l.b16 %v2082
    %v2087 = vpack.c.b16 %v2086, %v2085
    %v2090 = vsel %vm318, %v2076, 0
    %v2093 = vsel %vm318, %v2077, 0
    %v2096 = vsel %vm318, %v2078, 0
    %v2099 = vsel %vm318, %v2079, 0
    %2101 = vmatprep.subr.bf16.mxu0 0
    %2102 = vmatpush1.bf16.msra.mxu0 0
    %2103 = vmatprep.subr.bf16.mxu0 0
    %2104 = vmatpush1.bf16.msra.mxu0 0
    %2105 = vmatprep.subr.bf16.mxu0 0
    %2106 = vmatpush1.bf16.msra.mxu0 0
    %2107 = vmatprep.subr.bf16.mxu0 0
    %2108 = vmatpush1.bf16.msra.mxu0 0
    %2109 = vmatprep.subr.bf16.mxu0 0
    %2110 = vmatpush1.bf16.msra.mxu0 0
    %2111 = vmatprep.subr.bf16.mxu0 0
    %2112 = vmatpush1.bf16.msra.mxu0 0
    %2113 = vmatprep.subr.bf16.mxu0 0
    %2114 = vmatpush1.bf16.msra.mxu0 0
    %2115 = vmatprep.subr.bf16.mxu0 0
    %2116 = vmatpush1.bf16.msra.mxu0 %v2087
    %2117 = vmatprep.subr.bf16.mxu0 0
    %2118 = vmatpush2.bf16.msra.mxu0 0
    %2119 = vmatprep.subr.bf16.mxu0 0
    %2120 = vmatpush2.bf16.msra.mxu0 0
    %2121 = vmatprep.subr.bf16.mxu0 0
    %2122 = vmatpush2.bf16.msra.mxu0 0
    %2123 = vmatprep.subr.bf16.mxu0 0
    %2124 = vmatpush2.bf16.msra.mxu0 0
    %2125 = vmatprep.subr.bf16.mxu0 0
    %2126 = vmatpush2.bf16.msra.mxu0 0
    %2127 = vmatprep.subr.bf16.mxu0 0
    %2128 = vmatpush2.bf16.msra.mxu0 0
    %2129 = vmatprep.subr.bf16.mxu0 0
    %2130 = vmatpush2.bf16.msra.mxu0 0
    %2131 = vmatprep.subr.bf16.mxu0 0
    %2132 = vmatpush2.bf16.msra.mxu0 0
    %2133 = vmatprep.mubr.bf16.mxu0 0
    %2134 = vmatmul.mubr.bf16.gmra.mxu0 %v2090
    %v2135 = vpop.f32.mrf.mxu0
    %v2136 = vadd.f32 0.0, %v2135
    %v2137 = vpop.f32.mrf.mxu0
    %v2138 = vpop.f32.mrf.mxu0
    %v2139 = vadd.f32 0.0, %v2138
    %v2140 = vpop.f32.mrf.mxu0
    %2141 = vmatprep.mubr.bf16.mxu0 0
    %2142 = vmatmul.mubr.bf16.gmra.mxu0 %v2093
    %v2143 = vpop.f32.mrf.mxu0
    %v2144 = vadd.f32 0.0, %v2143
    %v2145 = vpop.f32.mrf.mxu0
    %v2146 = vpop.f32.mrf.mxu0
    %v2147 = vadd.f32 0.0, %v2146
    %v2148 = vpop.f32.mrf.mxu0
    %2149 = vmatprep.mubr.bf16.mxu0 0
    %2150 = vmatmul.mubr.bf16.gmra.mxu0 %v2096
    %v2151 = vpop.f32.mrf.mxu0
    %v2152 = vadd.f32 0.0, %v2151
    %v2153 = vpop.f32.mrf.mxu0
    %v2154 = vpop.f32.mrf.mxu0
    %v2155 = vadd.f32 0.0, %v2154
    %v2156 = vpop.f32.mrf.mxu0
    %2157 = vmatprep.mubr.bf16.mxu0 0
    %2158 = vmatmul.mubr.bf16.gmra.mxu0 %v2099
    %v2159 = vpop.f32.mrf.mxu0
    %v2160 = vadd.f32 0.0, %v2159
    %v2161 = vpop.f32.mrf.mxu0
    %v2162 = vpop.f32.mrf.mxu0
    %v2163 = vadd.f32 0.0, %v2162
    %v2164 = vpop.f32.mrf.mxu0
    %2165 = vdwg.mxu0
    %v2168 = vunpack.c.l.b16 %v1194
    %v2169 = vunpack.c.l.b16 %v1195
    %v2170 = vpack.c.b16 %v2169, %v2168
    %v2173 = vsel %vm318, %v1190, 0
    %v2176 = vsel %vm318, %v1191, 0
    %v2179 = vsel %vm318, %v1192, 0
    %v2182 = vsel %vm318, %v1193, 0
    %2184 = vmatprep.subr.bf16.mxu0 0
    %2185 = vmatpush1.bf16.msra.mxu0 0
    %2186 = vmatprep.subr.bf16.mxu0 0
    %2187 = vmatpush1.bf16.msra.mxu0 0
    %2188 = vmatprep.subr.bf16.mxu0 0
    %2189 = vmatpush1.bf16.msra.mxu0 0
    %2190 = vmatprep.subr.bf16.mxu0 0
    %2191 = vmatpush1.bf16.msra.mxu0 0
    %2192 = vmatprep.subr.bf16.mxu0 0
    %2193 = vmatpush1.bf16.msra.mxu0 0
    %2194 = vmatprep.subr.bf16.mxu0 0
    %2195 = vmatpush1.bf16.msra.mxu0 0
    %2196 = vmatprep.subr.bf16.mxu0 0
    %2197 = vmatpush1.bf16.msra.mxu0 0
    %2198 = vmatprep.subr.bf16.mxu0 0
    %2199 = vmatpush1.bf16.msra.mxu0 %v2170
    %2200 = vmatprep.subr.bf16.mxu0 0
    %2201 = vmatpush2.bf16.msra.mxu0 0
    %2202 = vmatprep.subr.bf16.mxu0 0
    %2203 = vmatpush2.bf16.msra.mxu0 0
    %2204 = vmatprep.subr.bf16.mxu0 0
    %2205 = vmatpush2.bf16.msra.mxu0 0
    %2206 = vmatprep.subr.bf16.mxu0 0
    %2207 = vmatpush2.bf16.msra.mxu0 0
    %2208 = vmatprep.subr.bf16.mxu0 0
    %2209 = vmatpush2.bf16.msra.mxu0 0
    %2210 = vmatprep.subr.bf16.mxu0 0
    %2211 = vmatpush2.bf16.msra.mxu0 0
    %2212 = vmatprep.subr.bf16.mxu0 0
    %2213 = vmatpush2.bf16.msra.mxu0 0
    %2214 = vmatprep.subr.bf16.mxu0 0
    %2215 = vmatpush2.bf16.msra.mxu0 0
    %2216 = vmatprep.mubr.bf16.mxu0 0
    %2217 = vmatmul.mubr.bf16.gmra.mxu0 %v2173
    %v2218 = vpop.f32.mrf.mxu0
    %v2219 = vadd.f32 %v2136, %v2218
    %v2220 = vpop.f32.mrf.mxu0
    %v2221 = vpop.f32.mrf.mxu0
    %v2222 = vadd.f32 %v2139, %v2221
    %v2223 = vpop.f32.mrf.mxu0
    %2224 = vmatprep.mubr.bf16.mxu0 0
    %2225 = vmatmul.mubr.bf16.gmra.mxu0 %v2176
    %v2226 = vpop.f32.mrf.mxu0
    %v2227 = vadd.f32 %v2144, %v2226
    %v2228 = vpop.f32.mrf.mxu0
    %v2229 = vpop.f32.mrf.mxu0
    %v2230 = vadd.f32 %v2147, %v2229
    %v2231 = vpop.f32.mrf.mxu0
    %2232 = vmatprep.mubr.bf16.mxu0 0
    %2233 = vmatmul.mubr.bf16.gmra.mxu0 %v2179
    %v2234 = vpop.f32.mrf.mxu0
    %v2235 = vadd.f32 %v2152, %v2234
    %v2236 = vpop.f32.mrf.mxu0
    %v2237 = vpop.f32.mrf.mxu0
    %v2238 = vadd.f32 %v2155, %v2237
    %v2239 = vpop.f32.mrf.mxu0
    %2240 = vmatprep.mubr.bf16.mxu0 0
    %2241 = vmatmul.mubr.bf16.gmra.mxu0 %v2182
    %v2242 = vpop.f32.mrf.mxu0
    %v2243 = vadd.f32 %v2160, %v2242
    %v2244 = vpop.f32.mrf.mxu0
    %v2245 = vpop.f32.mrf.mxu0
    %v2246 = vadd.f32 %v2163, %v2245
    %v2247 = vpop.f32.mrf.mxu0
    %2248 = vdwg.mxu0
    %v2249 = vadd.f32 %v70, %v2219
    %v2250 = vadd.f32 %v71, %v2222
    %v2251 = vadd.f32 %v72, %v2227
    %v2252 = vadd.f32 %v73, %v2230
    %v2253 = vadd.f32 %v74, %v2235
    %v2254 = vadd.f32 %v75, %v2238
    %v2255 = vadd.f32 %v76, %v2243
    %v2256 = vadd.f32 %v77, %v2246
    %v2257 = vlaneseq
    %v2258 = vshrl.u32 %v2257, 7
    %v2259 = vsub.s32 4, %v2258
    %v2260 = vrot.slane %v78, %v2259
    %v2261 = vadd.f32 %v2249, %v2260
    %v2262 = vadd.f32 %v2250, %v2260
    %v2263 = vadd.f32 %v2251, %v2260
    %v2264 = vadd.f32 %v2252, %v2260
    %v2265 = vadd.f32 %v2253, %v2260
    %v2266 = vadd.f32 %v2254, %v2260
    %v2267 = vadd.f32 %v2255, %v2260
    %v2268 = vadd.f32 %v2256, %v2260
    %v2269 = vsel %vm79, %v2261, 0.0
    %2270 = vadd.xlane.f32.xlu0 %v2269
    %v2271 = vpop.xlane.xlu0 %2270
    %v2272 = vsel %vm79, %v2262, 0.0
    %2273 = vadd.xlane.f32.xlu0 %v2272
    %v2274 = vpop.xlane.xlu0 %2273
    %v2275 = vsel %vm79, %v2263, 0.0
    %2276 = vadd.xlane.f32.xlu0 %v2275
    %v2277 = vpop.xlane.xlu0 %2276
    %v2278 = vsel %vm79, %v2264, 0.0
    %2279 = vadd.xlane.f32.xlu0 %v2278
    %v2280 = vpop.xlane.xlu0 %2279
    %v2281 = vsel %vm79, %v2265, 0.0
    %2282 = vadd.xlane.f32.xlu0 %v2281
    %v2283 = vpop.xlane.xlu0 %2282
    %v2284 = vsel %vm79, %v2266, 0.0
    %2285 = vadd.xlane.f32.xlu0 %v2284
    %v2286 = vpop.xlane.xlu0 %2285
    %v2287 = vsel %vm79, %v2267, 0.0
    %2288 = vadd.xlane.f32.xlu0 %v2287
    %v2289 = vpop.xlane.xlu0 %2288
    %v2290 = vsel %vm79, %v2268, 0.0
    %2291 = vadd.xlane.f32.xlu0 %v2290
    %v2292 = vpop.xlane.xlu0 %2291
    %v2293 = vmul.f32 %v2271, %v104
    %v2294 = vmul.f32 %v2274, %v104
    %v2295 = vmul.f32 %v2277, %v104
    %v2296 = vmul.f32 %v2280, %v104
    %v2297 = vmul.f32 %v2283, %v104
    %v2298 = vmul.f32 %v2286, %v104
    %v2299 = vmul.f32 %v2289, %v104
    %v2300 = vmul.f32 %v2292, %v104
    %v2301 = vsub.f32 %v2261, %v2293
    %v2302 = vsub.f32 %v2262, %v2294
    %v2303 = vsub.f32 %v2263, %v2295
    %v2304 = vsub.f32 %v2264, %v2296
    %v2305 = vsub.f32 %v2265, %v2297
    %v2306 = vsub.f32 %v2266, %v2298
    %v2307 = vsub.f32 %v2267, %v2299
    %v2308 = vsub.f32 %v2268, %v2300
    %v2309 = vmul.f32 %v2301, %v2301
    %v2310 = vmul.f32 %v2302, %v2302
    %v2311 = vmul.f32 %v2303, %v2303
    %v2312 = vmul.f32 %v2304, %v2304
    %v2313 = vmul.f32 %v2305, %v2305
    %v2314 = vmul.f32 %v2306, %v2306
    %v2315 = vmul.f32 %v2307, %v2307
    %v2316 = vmul.f32 %v2308, %v2308
    %v2317 = vsel %vm79, %v2309, 0.0
    %2318 = vadd.xlane.f32.xlu0 %v2317
    %v2319 = vpop.xlane.xlu0 %2318
    %v2320 = vsel %vm79, %v2310, 0.0
    %2321 = vadd.xlane.f32.xlu0 %v2320
    %v2322 = vpop.xlane.xlu0 %2321
    %v2323 = vsel %vm79, %v2311, 0.0
    %2324 = vadd.xlane.f32.xlu0 %v2323
    %v2325 = vpop.xlane.xlu0 %2324
    %v2326 = vsel %vm79, %v2312, 0.0
    %2327 = vadd.xlane.f32.xlu0 %v2326
    %v2328 = vpop.xlane.xlu0 %2327
    %v2329 = vsel %vm79, %v2313, 0.0
    %2330 = vadd.xlane.f32.xlu0 %v2329
    %v2331 = vpop.xlane.xlu0 %2330
    %v2332 = vsel %vm79, %v2314, 0.0
    %2333 = vadd.xlane.f32.xlu0 %v2332
    %v2334 = vpop.xlane.xlu0 %2333
    %v2335 = vsel %vm79, %v2315, 0.0
    %2336 = vadd.xlane.f32.xlu0 %v2335
    %v2337 = vpop.xlane.xlu0 %2336
    %v2338 = vsel %vm79, %v2316, 0.0
    %2339 = vadd.xlane.f32.xlu0 %v2338
    %v2340 = vpop.xlane.xlu0 %2339
    %v2341 = vmul.f32 %v2319, %v104
    %v2342 = vmul.f32 %v2322, %v104
    %v2343 = vmul.f32 %v2325, %v104
    %v2344 = vmul.f32 %v2328, %v104
    %v2345 = vmul.f32 %v2331, %v104
    %v2346 = vmul.f32 %v2334, %v104
    %v2347 = vmul.f32 %v2337, %v104
    %v2348 = vmul.f32 %v2340, %v104
    %v2349 = vadd.f32 %v2341, 1e-05
    %v2350 = vadd.f32 %v2342, 1e-05
    %v2351 = vadd.f32 %v2343, 1e-05
    %v2352 = vadd.f32 %v2344, 1e-05
    %v2353 = vadd.f32 %v2345, 1e-05
    %v2354 = vadd.f32 %v2346, 1e-05
    %v2355 = vadd.f32 %v2347, 1e-05
    %v2356 = vadd.f32 %v2348, 1e-05
    %v2357 = vrsqrt.pop %v2349
    %v2358 = vrsqrt.pop %v2350
    %v2359 = vrsqrt.pop %v2351
    %v2360 = vrsqrt.pop %v2352
    %v2361 = vrsqrt.pop %v2353
    %v2362 = vrsqrt.pop %v2354
    %v2363 = vrsqrt.pop %v2355
    %v2364 = vrsqrt.pop %v2356
    %v2365 = vmul.f32 %v2301, %v2357
    %v2366 = vmul.f32 %v2302, %v2358
    %v2367 = vmul.f32 %v2303, %v2359
    %v2368 = vmul.f32 %v2304, %v2360
    %v2369 = vmul.f32 %v2305, %v2361
    %v2370 = vmul.f32 %v2306, %v2362
    %v2371 = vmul.f32 %v2307, %v2363
    %v2372 = vmul.f32 %v2308, %v2364
    %v2373 = vlaneseq
    %v2374 = vshrl.u32 %v2373, 7
    %v2375 = vsub.s32 2, %v2374
    %v2376 = vrot.slane %v78, %v2375
    %v2377 = vmul.f32 %v2365, %v2376
    %v2378 = vmul.f32 %v2366, %v2376
    %v2379 = vmul.f32 %v2367, %v2376
    %v2380 = vmul.f32 %v2368, %v2376
    %v2381 = vmul.f32 %v2369, %v2376
    %v2382 = vmul.f32 %v2370, %v2376
    %v2383 = vmul.f32 %v2371, %v2376
    %v2384 = vmul.f32 %v2372, %v2376
    %v2385 = vlaneseq
    %v2386 = vshrl.u32 %v2385, 7
    %v2387 = vsub.s32 3, %v2386
    %v2388 = vrot.slane %v78, %v2387
    %v2389 = vadd.f32 %v2377, %v2388
    %v2390 = vadd.f32 %v2378, %v2388
    %v2391 = vadd.f32 %v2379, %v2388
    %v2392 = vadd.f32 %v2380, %v2388
    %v2393 = vadd.f32 %v2381, %v2388
    %v2394 = vadd.f32 %v2382, %v2388
    %v2395 = vadd.f32 %v2383, %v2388
    %v2396 = vadd.f32 %v2384, %v2388
    %v2397 = vpack.c.bf16 %v2390, %v2389
    %v2398 = vpack.c.bf16 %v2392, %v2391
    %v2399 = vpack.c.bf16 %v2394, %v2393
    %v2400 = vpack.c.bf16 %v2396, %v2395
    %v2401 = vld [vmem:[#allocation5] sm:$0xf]
    %v2402 = vld [vmem:[#allocation5 + $0x4] sm:$0xf]
    %v2403 = vld [vmem:[#allocation5 + $0x8] sm:$0xf]
    %v2404 = vld [vmem:[#allocation5 + $0xc] sm:$0xf]
    %v2405 = vld [vmem:[%s5] sm:$0x1]
    %v2407 = vlaneseq
    %v2408 = vshrl.u32 %v2407, 7
    %v2409 = vsub.s32 0, %v2408
    %v2410 = vrot.slane %v2405, %v2409
    %v2416 = vunpack.c.l.b16 %v2401
    %v2417 = vunpack.c.l.b16 %v2402
    %v2418 = vunpack.c.l.b16 %v2403
    %v2419 = vunpack.c.l.b16 %v2404
    %v2420 = vpack.c.b16 %v2417, %v2416
    %v2421 = vpack.c.b16 %v2419, %v2418
    %v2425 = vsel %vm79, %v2397, 0
    %v2428 = vsel %vm79, %v2398, 0
    %v2431 = vsel %vm79, %v2399, 0
    %v2434 = vsel %vm79, %v2400, 0
    %2436 = vmatprep.subr.bf16.mxu0 0
    %2437 = vmatpush1.bf16.msra.mxu0 0
    %2438 = vmatprep.subr.bf16.mxu0 0
    %2439 = vmatpush1.bf16.msra.mxu0 0
    %2440 = vmatprep.subr.bf16.mxu0 0
    %2441 = vmatpush1.bf16.msra.mxu0 0
    %2442 = vmatprep.subr.bf16.mxu0 0
    %2443 = vmatpush1.bf16.msra.mxu0 0
    %2444 = vmatprep.subr.bf16.mxu0 0
    %2445 = vmatpush1.bf16.msra.mxu0 0
    %2446 = vmatprep.subr.bf16.mxu0 0
    %2447 = vmatpush1.bf16.msra.mxu0 0
    %2448 = vmatprep.subr.bf16.mxu0 0
    %2449 = vmatpush1.bf16.msra.mxu0 %v2421
    %2450 = vmatprep.subr.bf16.mxu0 0
    %2451 = vmatpush1.bf16.msra.mxu0 %v2420
    %2452 = vmatprep.subr.bf16.mxu0 0
    %2453 = vmatpush2.bf16.msra.mxu0 0
    %2454 = vmatprep.subr.bf16.mxu0 0
    %2455 = vmatpush2.bf16.msra.mxu0 0
    %2456 = vmatprep.subr.bf16.mxu0 0
    %2457 = vmatpush2.bf16.msra.mxu0 0
    %2458 = vmatprep.subr.bf16.mxu0 0
    %2459 = vmatpush2.bf16.msra.mxu0 0
    %2460 = vmatprep.subr.bf16.mxu0 0
    %2461 = vmatpush2.bf16.msra.mxu0 0
    %2462 = vmatprep.subr.bf16.mxu0 0
    %2463 = vmatpush2.bf16.msra.mxu0 0
    %2464 = vmatprep.subr.bf16.mxu0 0
    %2465 = vmatpush2.bf16.msra.mxu0 0
    %2466 = vmatprep.subr.bf16.mxu0 0
    %2467 = vmatpush2.bf16.msra.mxu0 0
    %2468 = vmatprep.mubr.bf16.mxu0 0
    %2469 = vmatmul.mubr.bf16.gmra.mxu0 %v2425
    %v2470 = vpop.f32.mrf.mxu0
    %v2471 = vadd.f32 %v2410, %v2470
    %v2472 = vpop.f32.mrf.mxu0
    %v2473 = vpop.f32.mrf.mxu0
    %v2474 = vadd.f32 %v2410, %v2473
    %v2475 = vpop.f32.mrf.mxu0
    %2476 = vmatprep.mubr.bf16.mxu0 0
    %2477 = vmatmul.mubr.bf16.gmra.mxu0 %v2428
    %v2478 = vpop.f32.mrf.mxu0
    %v2479 = vadd.f32 %v2410, %v2478
    %v2480 = vpop.f32.mrf.mxu0
    %v2481 = vpop.f32.mrf.mxu0
    %v2482 = vadd.f32 %v2410, %v2481
    %v2483 = vpop.f32.mrf.mxu0
    %2484 = vmatprep.mubr.bf16.mxu0 0
    %2485 = vmatmul.mubr.bf16.gmra.mxu0 %v2431
    %v2486 = vpop.f32.mrf.mxu0
    %v2487 = vadd.f32 %v2410, %v2486
    %v2488 = vpop.f32.mrf.mxu0
    %v2489 = vpop.f32.mrf.mxu0
    %v2490 = vadd.f32 %v2410, %v2489
    %v2491 = vpop.f32.mrf.mxu0
    %2492 = vmatprep.mubr.bf16.mxu0 0
    %2493 = vmatmul.mubr.bf16.gmra.mxu0 %v2434
    %v2494 = vpop.f32.mrf.mxu0
    %v2495 = vadd.f32 %v2410, %v2494
    %v2496 = vpop.f32.mrf.mxu0
    %v2497 = vpop.f32.mrf.mxu0
    %v2498 = vadd.f32 %v2410, %v2497
    %v2499 = vpop.f32.mrf.mxu0
    %2500 = vdwg.mxu0
    %v2501 = vmax.f32 %v2471, 0.0
    %v2502 = vmax.f32 %v2474, 0.0
    %v2503 = vmax.f32 %v2479, 0.0
    %v2504 = vmax.f32 %v2482, 0.0
    %v2505 = vmax.f32 %v2487, 0.0
    %v2506 = vmax.f32 %v2490, 0.0
    %v2507 = vmax.f32 %v2495, 0.0
    %v2508 = vmax.f32 %v2498, 0.0
    %v2509 = vpack.c.bf16 %v2502, %v2501
    %v2510 = vpack.c.bf16 %v2504, %v2503
    %v2511 = vpack.c.bf16 %v2506, %v2505
    %v2512 = vpack.c.bf16 %v2508, %v2507
    %v2513 = vld [vmem:[%s4] sm:$0xf]
    %v2514 = vld [vmem:[%s4 + $0x4] sm:$0xf]
    %v2515 = vld [vmem:[%s4 + $0x8] sm:$0xf]
    %v2516 = vld [vmem:[%s4 + $0xc] sm:$0xf]
    %v2517 = vld [vmem:[%s4 + $0x10] sm:$0xf]
    %v2518 = vld [vmem:[%s4 + $0x14] sm:$0xf]
    %v2519 = vld [vmem:[%s4 + $0x18] sm:$0xf]
    %v2520 = vld [vmem:[%s4 + $0x1c] sm:$0xf]
    %v2521 = vld [vmem:[%s4 + $0x20] sm:$0xf]
    %v2522 = vld [vmem:[%s4 + $0x24] sm:$0xf]
    %v2523 = vld [vmem:[%s4 + $0x28] sm:$0xf]
    %v2524 = vld [vmem:[%s4 + $0x2c] sm:$0xf]
    %v2525 = vld [vmem:[%s4 + $0x30] sm:$0xf]
    %v2526 = vld [vmem:[%s4 + $0x34] sm:$0xf]
    %v2527 = vld [vmem:[%s4 + $0x38] sm:$0xf]
    %v2528 = vld [vmem:[%s4 + $0x3c] sm:$0xf]
    %v2529 = vlaneseq
    %v2530 = vshrl.u32 %v2529, 7
    %v2531 = vsub.s32 5, %v2530
    %v2532 = vrot.slane %v78, %v2531
    %v2549 = vunpack.c.l.b16 %v2513
    %v2550 = vunpack.c.l.b16 %v2514
    %v2551 = vunpack.c.l.b16 %v2515
    %v2552 = vunpack.c.l.b16 %v2516
    %v2553 = vunpack.c.l.b16 %v2517
    %v2554 = vunpack.c.l.b16 %v2518
    %v2555 = vunpack.c.l.b16 %v2519
    %v2556 = vunpack.c.l.b16 %v2520
    %v2557 = vunpack.c.l.b16 %v2521
    %v2558 = vunpack.c.l.b16 %v2522
    %v2559 = vunpack.c.l.b16 %v2523
    %v2560 = vunpack.c.l.b16 %v2524
    %v2561 = vunpack.c.l.b16 %v2525
    %v2562 = vunpack.c.l.b16 %v2526
    %v2563 = vunpack.c.l.b16 %v2527
    %v2564 = vunpack.c.l.b16 %v2528
    %v2565 = vpack.c.b16 %v2550, %v2549
    %v2566 = vpack.c.b16 %v2552, %v2551
    %v2567 = vpack.c.b16 %v2554, %v2553
    %v2568 = vpack.c.b16 %v2556, %v2555
    %v2569 = vpack.c.b16 %v2558, %v2557
    %v2570 = vpack.c.b16 %v2560, %v2559
    %v2571 = vpack.c.b16 %v2562, %v2561
    %v2572 = vpack.c.b16 %v2564, %v2563
    %2581 = vmatprep.subr.bf16.mxu0 0
    %2582 = vmatpush1.bf16.msra.mxu0 %v2572
    %2583 = vmatprep.subr.bf16.mxu0 0
    %2584 = vmatpush1.bf16.msra.mxu0 %v2571
    %2585 = vmatprep.subr.bf16.mxu0 0
    %2586 = vmatpush1.bf16.msra.mxu0 %v2570
    %2587 = vmatprep.subr.bf16.mxu0 0
    %2588 = vmatpush1.bf16.msra.mxu0 %v2569
    %2589 = vmatprep.subr.bf16.mxu0 0
    %2590 = vmatpush1.bf16.msra.mxu0 %v2568
    %2591 = vmatprep.subr.bf16.mxu0 0
    %2592 = vmatpush1.bf16.msra.mxu0 %v2567
    %2593 = vmatprep.subr.bf16.mxu0 0
    %2594 = vmatpush1.bf16.msra.mxu0 %v2566
    %2595 = vmatprep.subr.bf16.mxu0 0
    %2596 = vmatpush1.bf16.msra.mxu0 %v2565
    %2597 = vmatprep.subr.bf16.mxu0 0
    %2598 = vmatpush2.bf16.msra.mxu0 0
    %2599 = vmatprep.subr.bf16.mxu0 0
    %2600 = vmatpush2.bf16.msra.mxu0 0
    %2601 = vmatprep.subr.bf16.mxu0 0
    %2602 = vmatpush2.bf16.msra.mxu0 0
    %2603 = vmatprep.subr.bf16.mxu0 0
    %2604 = vmatpush2.bf16.msra.mxu0 0
    %2605 = vmatprep.subr.bf16.mxu0 0
    %2606 = vmatpush2.bf16.msra.mxu0 0
    %2607 = vmatprep.subr.bf16.mxu0 0
    %2608 = vmatpush2.bf16.msra.mxu0 0
    %2609 = vmatprep.subr.bf16.mxu0 0
    %2610 = vmatpush2.bf16.msra.mxu0 0
    %2611 = vmatprep.subr.bf16.mxu0 0
    %2612 = vmatpush2.bf16.msra.mxu0 0
    %2613 = vmatprep.mubr.bf16.mxu0 0
    %2614 = vmatmul.mubr.bf16.gmra.mxu0 %v2509
    %v2615 = vpop.f32.mrf.mxu0
    %v2616 = vadd.f32 %v2532, %v2615
    %v2617 = vpop.f32.mrf.mxu0
    %v2618 = vpop.f32.mrf.mxu0
    %v2619 = vadd.f32 %v2532, %v2618
    %v2620 = vpop.f32.mrf.mxu0
    %2621 = vmatprep.mubr.bf16.mxu0 0
    %2622 = vmatmul.mubr.bf16.gmra.mxu0 %v2510
    %v2623 = vpop.f32.mrf.mxu0
    %v2624 = vadd.f32 %v2532, %v2623
    %v2625 = vpop.f32.mrf.mxu0
    %v2626 = vpop.f32.mrf.mxu0
    %v2627 = vadd.f32 %v2532, %v2626
    %v2628 = vpop.f32.mrf.mxu0
    %2629 = vmatprep.mubr.bf16.mxu0 0
    %2630 = vmatmul.mubr.bf16.gmra.mxu0 %v2511
    %v2631 = vpop.f32.mrf.mxu0
    %v2632 = vadd.f32 %v2532, %v2631
    %v2633 = vpop.f32.mrf.mxu0
    %v2634 = vpop.f32.mrf.mxu0
    %v2635 = vadd.f32 %v2532, %v2634
    %v2636 = vpop.f32.mrf.mxu0
    %2637 = vmatprep.mubr.bf16.mxu0 0
    %2638 = vmatmul.mubr.bf16.gmra.mxu0 %v2512
    %v2639 = vpop.f32.mrf.mxu0
    %v2640 = vadd.f32 %v2532, %v2639
    %v2641 = vpop.f32.mrf.mxu0
    %v2642 = vpop.f32.mrf.mxu0
    %v2643 = vadd.f32 %v2532, %v2642
    %v2644 = vpop.f32.mrf.mxu0
    %2645 = vdwg.mxu0
    %v2646 = vadd.f32 %v2261, %v2616
    %v2647 = vadd.f32 %v2262, %v2619
    %v2648 = vadd.f32 %v2263, %v2624
    %v2649 = vadd.f32 %v2264, %v2627
    %v2650 = vadd.f32 %v2265, %v2632
    %v2651 = vadd.f32 %v2266, %v2635
    %v2652 = vadd.f32 %v2267, %v2640
    %v2653 = vadd.f32 %v2268, %v2643
    %2654 = vst.msk [vmem:[#allocation8] sm:$0xff] %vm79, %v2646
    %2655 = vst.msk [vmem:[#allocation8 + $0x8] sm:$0xff] %vm79, %v2647
    %2656 = vst.msk [vmem:[#allocation8 + $0x10] sm:$0xff] %vm79, %v2648
    %2657 = vst.msk [vmem:[#allocation8 + $0x18] sm:$0xff] %vm79, %v2649
    %2658 = vst.msk [vmem:[#allocation8 + $0x20] sm:$0xff] %vm79, %v2650
    %2659 = vst.msk [vmem:[#allocation8 + $0x28] sm:$0xff] %vm79, %v2651
    %2660 = vst.msk [vmem:[#allocation8 + $0x30] sm:$0xff] %vm79, %v2652
    %2661 = vst.msk [vmem:[#allocation8 + $0x38] sm:$0xff] %vm79, %v2653
    // Predicated region
    $region46: #{tpu_custom_call.1} parent=1 // pred_check
      _
    $region47: #{tpu_custom_call.1} parent=1 // pred_check_branch
      %2663 = sbr.rel (0) target = $region49
    $region48: #{tpu_custom_call.1} parent=1 // pred_region
      %s2665 = ssub.s32 1024, 1024
      %2666 = vsyncadd [#allocation4], %s2665
      %s2667 = sshll.u32 [#allocation8], 4
      %s2668 = int_to_ptr.vmem [resolvable:$true] %s2667
      %2673 = dma.vmem_to_hbm [thread:$0]  %s2668, 1024, %s8, [#allocation4], 128, 128, 8
    $region49: #{tpu_custom_call.1} parent=1 // pred_fallthru
      _
    // Predicated region
    $region50: #{tpu_custom_call.1} parent=1 // pred_check
      _
    $region51: #{tpu_custom_call.1} parent=1 // pred_check_branch
      %2675 = sbr.rel (0) target = $region53
    $region52: #{tpu_custom_call.1} parent=1 // pred_region
      %2676 = dma.done [#allocation4], 1024
    $region53: #{tpu_custom_call.1} parent=1 // pred_fallthru
      _
    %2677 = vsyncpa [#allocation3], 1
    %2678 = vsyncpa [#allocation6], 1
    %2679 = vsyncpa [#allocation4], 1

</llo_original>
